<compile_context>
chip_gen: v7x
topology: tpu7x:2x2x1
jax: 0.10.0
libtpu: 0.0.40
codegen_flags: <defaults>
</compile_context>

<pallas_src>
import functools
import numpy as np

import jax
import jax.numpy as jnp
from jax.experimental import pallas as pl
from jax.experimental.pallas import tpu as pltpu


TOKEN_PATTERN = [92542, 92543, 525, 11353, 364]

_VMEM = pl.BlockSpec(memory_space=pltpu.MemorySpace.VMEM)
_SMEM = pl.BlockSpec(memory_space=pltpu.MemorySpace.SMEM)
_SLAB_LANES = 128   # one lane tile: single unmasked-width output DMA


# ---------------------------------------------------------------------------
# On-device gating-token search (shifted static slices, no gather)
# ---------------------------------------------------------------------------

def find_gating_positions(input_ids):
    """Last occurrence of TOKEN_PATTERN per row, computed on device."""
    B, S = input_ids.shape
    n = len(TOKEN_PATTERN)
    W = S - n + 1
    match = jnp.ones((B, W), dtype=jnp.bool_)
    for k, tok in enumerate(TOKEN_PATTERN):
        match = jnp.logical_and(match, input_ids[:, k:k + W] == tok)
    positions = jnp.arange(W, dtype=jnp.int32)
    # TODO(synk): PyTorch raises ValueError when the pattern is absent; here a
    # missing pattern yields -1 (the caller clamps it to 0).
    return jnp.max(jnp.where(match, positions[None, :], -1), axis=-1).astype(jnp.int32)


# ---------------------------------------------------------------------------
# Fused Pallas kernel: rewards + both gating MLPs + softmaxes + scoring
# ---------------------------------------------------------------------------

def _fused_reward_kernel(asp_scale_ref, crit_scale_ref,
                         hs_ref, pe_ref, wreg_ref, memb_ref, memb_t_ref,
                         w0c_ref, b0c_ref,
                         aw1, ab1, aw2, ab2, awo, abo,
                         cw1, cb1, cw2, cb2, cwo, cbo,
                         out_ref, *, inv_temperature):
    f32 = jnp.float32
    hidden = aw1.shape[0]
    num_aspects = memb_t_ref.shape[0]

    def w(ref):
        # weights stream over HBM as bf16; upcast in-register -> exact f32 math
        return ref[...].astype(f32)

    hs = hs_ref[...]                    # (B, H)  hidden state at last token
    pe = pe_ref[...]                    # (B, H)  prompt embedding at gate token

    # rewards = regression_layer(hs) @ reward_transform_matrix (folded on host)
    rewards = jnp.dot(hs, w(wreg_ref), preferred_element_type=f32)       # (B, NO)

    # merged layer 0 of BOTH gating MLPs: single K=H matmul on the shared pe
    h0 = jnp.maximum(jnp.dot(pe, w(w0c_ref), preferred_element_type=f32)
                     + b0c_ref[...], 0.0)                                # (B, 2*hidden)
    ha = h0[:, :hidden]
    hc = h0[:, hidden:]

    def tail(h, w1, b1, w2, b2, wo, bo):
        h = jnp.maximum(jnp.dot(h, w(w1), preferred_element_type=f32) + b1[...], 0.0)
        h = jnp.maximum(jnp.dot(h, w(w2), preferred_element_type=f32) + b2[...], 0.0)
        return jnp.dot(h, w(wo), preferred_element_type=f32) + bo[...]

    asp_logits = tail(ha, aw1, ab1, aw2, ab2, awo, abo)                  # (B, A)
    crit_logits = tail(hc, cw1, cb1, cw2, cb2, cwo, cbo)                 # (B, NO)

    # aspect gate: softmax(logits / T, axis=-1) * logit_scale  (exact division)
    a = asp_logits * inv_temperature
    a = a - jnp.max(a, axis=-1, keepdims=True)
    ea = jnp.exp(a)
    asp_gate = ea / jnp.sum(ea, axis=-1, keepdims=True) * asp_scale_ref[0, 0]

    # per-aspect criteria softmax on the flat lane-dense layout, with the
    # PER-GROUP max and exact division; group masks are static where-selects
    # on the VPU (no tiny MXU weight pushes).
    c = crit_logits * inv_temperature
    neg = jnp.float32(-1e30)
    cmax = jnp.zeros_like(c)
    for g in range(num_aspects):
        in_g = memb_t_ref[g:g + 1, :] > 0.0                              # (1, NO)
        gmax = jnp.max(jnp.where(in_g, c, neg), axis=-1, keepdims=True)  # (B, 1)
        cmax = jnp.where(in_g, gmax, cmax)
    ec = jnp.exp(c - cmax)
    denom = jnp.ones_like(ec)
    for g in range(num_aspects):
        in_g = memb_t_ref[g:g + 1, :] > 0.0
        gsum = jnp.sum(jnp.where(in_g, ec, 0.0), axis=-1, keepdims=True)
        denom = jnp.where(in_g, gsum, denom)
    weights = ec / denom * crit_scale_ref[0, 0]                          # (B, NO)

    ascores = jnp.dot(rewards * weights, memb_ref[...],
                      preferred_element_type=f32)                        # (B, A)
    score = jnp.sum(ascores * asp_gate, axis=-1, keepdims=True)          # (B, 1)

    # pack everything into one lane-dense (B, 128) slab -> single output DMA
    no = rewards.shape[1]
    na = ascores.shape[1]
    out_ref[...] = jnp.zeros_like(out_ref)
    o = 0
    out_ref[:, o:o + no] = rewards
    o += no
    out_ref[:, o:o + no] = crit_logits
    o += no
    out_ref[:, o:o + na] = asp_gate
    o += na
    out_ref[:, o:o + no] = weights
    o += no
    out_ref[:, o:o + na] = ascores
    o += na
    out_ref[:, o:o + 1] = score


def fused_reward_head(hidden_states, prompt_embedding, head, temperature):
    B = hidden_states.shape[0]
    no = head["num_objectives"]
    na = head["num_aspects"]
    assert 3 * no + 2 * na + 1 <= _SLAB_LANES

    # pad batch to a multiple of 8 sublanes (free on the mem-bound path)
    bp = max(8, -(-B // 8) * 8)
    if bp != B:
        padding = ((0, bp - B), (0, 0))
        hidden_states = jnp.pad(hidden_states, padding)
        prompt_embedding = jnp.pad(prompt_embedding, padding)

    kernel = functools.partial(_fused_reward_kernel,
                               inv_temperature=1.0 / float(temperature))
    slab = pl.pallas_call(
        kernel,
        out_shape=jax.ShapeDtypeStruct((bp, _SLAB_LANES), jnp.float32),
        in_specs=[_SMEM, _SMEM] + [_VMEM] * 19,
        out_specs=_VMEM,
        # explicit scoped-VMEM limit (v5e default is only 16 MiB); at toy sizes
        # the working set is tiny, at production dims see TODO(synk) above.
        compiler_params=pltpu.CompilerParams(vmem_limit_bytes=32 * 1024 * 1024),
    )(head["asp_scale"], head["crit_scale"],
      hidden_states, prompt_embedding, head["w_reg"], head["memb"], head["memb_t"],
      head["w0_cat"], head["b0_cat"],
      head["aw1"], head["ab1"], head["aw2"], head["ab2"], head["awo"], head["abo"],
      head["cw1"], head["cb1"], head["cw2"], head["cb2"], head["cwo"], head["cbo"])

    slab = slab[:B]
    o = 0
    rewards = slab[:, o:o + no]; o += no
    crit = slab[:, o:o + no]; o += no
    asp_gate = slab[:, o:o + na]; o += na
    weights = slab[:, o:o + no]; o += no
    ascores = slab[:, o:o + na]; o += na
    score = slab[:, o]
    return rewards, crit, asp_gate, weights, ascores, score


# ---------------------------------------------------------------------------
# Parameter init / one-time prep / forward glue
# ---------------------------------------------------------------------------

def init_gating_params(key, in_features, hidden_dim, out_features, logit_scale=1.0):
    """GatingNetwork, n_hidden=3 (module default). Weights transposed + bf16."""
    ks = jax.random.split(key, 8)
    s = 0.05

    def wm(k, shp):
        return (jax.random.normal(k, shp) * s).astype(jnp.bfloat16)

    def bm(k, shp):
        return (jax.random.normal(k, shp) * s).astype(jnp.float32)

    return {
        "w0": wm(ks[0], (in_features, hidden_dim)), "b0": bm(ks[1], (1, hidden_dim)),
        "w1": wm(ks[2], (hidden_dim, hidden_dim)), "b1": bm(ks[3], (1, hidden_dim)),
        "w2": wm(ks[4], (hidden_dim, hidden_dim)), "b2": bm(ks[5], (1, hidden_dim)),
        "wo": wm(ks[6], (hidden_dim, out_features)), "bo": bm(ks[7], (1, out_features)),
        "scale": jnp.full((1, 1), logit_scale, jnp.float32),
    }


def prepare_head_params(params, cfg):
    """One-time prep (hoisted out of the per-call forward): fold the frozen
    reward_transform_matrix, merge layer-0 weights, build membership tables."""
    no, na = cfg["num_objectives"], cfg["num_aspects"]
    ag, cg = params["aspect_gating"], params["criteria_gating"]

    # frozen identity transform folded into the regression weight (lossless)
    w_reg = (params["w_reg_T"].astype(jnp.float32)
             @ params["transform"]).astype(jnp.bfloat16)

    # static 0/1 membership (NO, A); aspect column order == dict iteration order
    memb_np = np.zeros((no, na), np.float32)
    perm = []
    for a_idx, (_, idxs) in enumerate(cfg["aspect2criteria"].items()):
        for c_idx in idxs:
            memb_np[c_idx, a_idx] = 1.0
        perm.extend(idxs)

    return {
        "num_objectives": no, "num_aspects": na,
        "w_reg": w_reg,
        "memb": jnp.asarray(memb_np),
        "memb_t": jnp.asarray(np.ascontiguousarray(memb_np.T)),
        "perm": jnp.asarray(perm, jnp.int32),
        "w0_cat": jnp.concatenate([ag["w0"], cg["w0"]], axis=1),
        "b0_cat": jnp.concatenate([ag["b0"], cg["b0"]], axis=1),
        "aw1": ag["w1"], "ab1": ag["b1"], "aw2": ag["w2"], "ab2": ag["b2"],
        "awo": ag["wo"], "abo": ag["bo"], "asp_scale": ag["scale"],
        "cw1": cg["w1"], "cb1": cg["b1"], "cw2": cg["w2"], "cb2": cg["b2"],
        "cwo": cg["wo"], "cbo": cg["bo"], "crit_scale": cg["scale"],
    }


def internvl_reward_forward(tokens_hidden_states, input_ids, head, cfg):
    B, S, H = tokens_hidden_states.shape
    batch_idx = jnp.arange(B)

    # sequence_lengths = (argmax(input_ids == pad) - 1) % S   (as in PyTorch)
    is_pad = (input_ids == cfg["pad_token_id"]).astype(jnp.int32)
    sequence_lengths = (jnp.argmax(is_pad, axis=-1) - 1) % S
    hidden_states = tokens_hidden_states[batch_idx, sequence_lengths]       # (B, H)

    gate_pos = jnp.maximum(find_gating_positions(input_ids), 0)
    prompt_embedding = tokens_hidden_states[batch_idx, gate_pos]            # (B, H)
    # TODO(synk): at production seq lengths, move these two row gathers into
    # the kernel via PrefetchScalarGridSpec scalar prefetch + pl.Element maps.

    (rewards, criteria_gating_output, aspect_gating_output,
     weights_flat, aspect_scores, score) = fused_reward_head(
        hidden_states, prompt_embedding, head, cfg["gating_temperature"])

    # reorder flat (criterion-indexed) weights into the module's concatenated
    # per-aspect order (identity when criteria indices are already 0..NO-1).
    final_aspect_weights = weights_flat[:, head["perm"]]

    # PyTorch returns the loop-leaked last `weighted_scores`
    weighted_scores = aspect_scores[:, -1]

    return {
        "rewards": rewards,
        "hidden_state": hidden_states,
        "prompt_embedding": prompt_embedding,
        "criteria_gating_output": criteria_gating_output,
        "aspect_gating_output": aspect_gating_output,
        "aspect_weights": final_aspect_weights,
        "weighted_scores": weighted_scores,
        "aspect_scores": aspect_scores,
        "score": score,
    }


# ---------------------------------------------------------------------------
# Pure-JAX reference (silent correctness check)
# ---------------------------------------------------------------------------

def _gating_ref(x, p):
    h = x
    for wk, bk in (("w0", "b0"), ("w1", "b1"), ("w2", "b2")):
        h = jnp.maximum(h @ p[wk].astype(jnp.float32) + p[bk], 0.0)
    return h @ p["wo"].astype(jnp.float32) + p["bo"]


def forward_ref(tokens_hidden_states, input_ids, params, cfg):
    B, S, H = tokens_hidden_states.shape
    temperature = cfg["gating_temperature"]
    is_pad = (input_ids == cfg["pad_token_id"]).astype(jnp.int32)
    seq_len = (jnp.argmax(is_pad, axis=-1) - 1) % S
    batch_idx = jnp.arange(B)
    hidden_states = tokens_hidden_states[batch_idx, seq_len]
    gate_pos = jnp.maximum(find_gating_positions(input_ids), 0)
    prompt_embedding = tokens_hidden_states[batch_idx, gate_pos]

    rewards = (hidden_states @ params["w_reg_T"].astype(jnp.float32)) @ params["transform"]
    asp_logits = _gating_ref(prompt_embedding, params["aspect_gating"])
    asp_gate = (jax.nn.softmax(asp_logits / temperature, axis=1)
                * params["aspect_gating"]["scale"][0, 0])
    crit = _gating_ref(prompt_embedding, params["criteria_gating"])

    aspect_scores, weights = [], []
    for _, idxs in cfg["aspect2criteria"].items():
        idxs = jnp.asarray(idxs, jnp.int32)
        w = (jax.nn.softmax(crit[:, idxs] / temperature, axis=-1)
             * params["criteria_gating"]["scale"][0, 0])
        weights.append(w)
        aspect_scores.append(jnp.sum(rewards[:, idxs] * w, axis=-1))
    aspect_scores = jnp.stack(aspect_scores, axis=1)
    score = jnp.sum(aspect_scores * asp_gate, axis=-1)
    return rewards, asp_gate, crit, jnp.concatenate(weights, -1), aspect_scores, score


# ---------------------------------------------------------------------------
# Main
# ---------------------------------------------------------------------------

if __name__ == "__main__":
    key = jax.random.PRNGKey(0)
    B, S, H = 2, 16, 32
    cfg = {
        "num_labels": 1,
        "num_objectives": 8,
        "num_aspects": 2,
        "aspect2criteria": {0: [0, 1, 2], 1: [3, 4, 5, 6, 7]},
        "gating_temperature": 10.0,
        "gating_hidden_dim": 32,
        "gating_n_hidden": 3,
        "pad_token_id": 2,
    }

    # synthetic input_ids containing the gating token pattern + padding
    ids = np.full((B, S), cfg["pad_token_id"], dtype=np.int32)
    row0 = [5, 92542, 92543, 525, 11353, 364, 7, 9, 11, 13]
    row1 = [3, 4, 92542, 92543, 525, 11353, 364, 8]
    ids[0, : len(row0)] = row0
    ids[1, : len(row1)] = row1
    input_ids = jnp.asarray(ids)

    keys = jax.random.split(key, 6)
    # stands in for the backbone's last-layer hidden states
    tokens_hidden_states = jax.random.normal(keys[0], (B, S, H), jnp.float32)
    # pixel_values are consumed only by the (unimplemented) backbone
    pixel_values = jax.random.normal(keys[1], (B, 3, 8, 8), jnp.float32)  # unused

    num_obj = cfg["num_objectives"]
    params = {
        # regression_layer: Linear(H, num_objectives, bias=False) -> W.T (bf16)
        "w_reg_T": (jax.random.normal(keys[2], (H, num_obj)) * 0.05).astype(jnp.bfloat16),
        # reward_transform_matrix: identity, not trained (folded once in prep)
        "transform": jnp.eye(num_obj, dtype=jnp.float32),
        "aspect_gating": init_gating_params(keys[3], H, cfg["gating_hidden_dim"],
                                            cfg["num_aspects"]),
        "criteria_gating": init_gating_params(keys[4], H, cfg["gating_hidden_dim"],
                                              cfg["num_objectives"]),
    }

    head = prepare_head_params(params, cfg)           # one-time prep (hoisted)

    out = internvl_reward_forward(tokens_hidden_states, input_ids, head, cfg)
    jax.block_until_ready(out["score"])

    # silent correctness check against a pure-JAX f32 reference
    rewards_r, asp_gate_r, crit_r, weights_r, ascore_r, score_r = forward_ref(
        tokens_hidden_states, input_ids, params, cfg)
    atol = 1e-3
    assert np.allclose(np.asarray(out["rewards"]), np.asarray(rewards_r), atol=atol)
    assert np.allclose(np.asarray(out["aspect_gating_output"]), np.asarray(asp_gate_r), atol=atol)
    assert np.allclose(np.asarray(out["criteria_gating_output"]), np.asarray(crit_r), atol=atol)
    assert np.allclose(np.asarray(out["aspect_weights"]), np.asarray(weights_r), atol=atol)
    assert np.allclose(np.asarray(out["aspect_scores"]), np.asarray(ascore_r), atol=atol)
    assert np.allclose(np.asarray(out["score"]), np.asarray(score_r), atol=atol)

    print("KERNEL_OK")
</pallas_src>

<mosaic_0001>
module attributes {stable_mosaic.version = 11 : i64} {
  func.func @_fused_reward_kernel(%arg0: memref<1x1xf32, #tpu.memory_space<smem>>, %arg1: memref<1x1xf32, #tpu.memory_space<smem>>, %arg2: memref<8x32xf32, #tpu.memory_space<vmem>>, %arg3: memref<8x32xf32, #tpu.memory_space<vmem>>, %arg4: memref<32x8xbf16, #tpu.memory_space<vmem>>, %arg5: memref<8x2xf32, #tpu.memory_space<vmem>>, %arg6: memref<2x8xf32, #tpu.memory_space<vmem>>, %arg7: memref<32x64xbf16, #tpu.memory_space<vmem>>, %arg8: memref<1x64xf32, #tpu.memory_space<vmem>>, %arg9: memref<32x32xbf16, #tpu.memory_space<vmem>>, %arg10: memref<1x32xf32, #tpu.memory_space<vmem>>, %arg11: memref<32x32xbf16, #tpu.memory_space<vmem>>, %arg12: memref<1x32xf32, #tpu.memory_space<vmem>>, %arg13: memref<32x2xbf16, #tpu.memory_space<vmem>>, %arg14: memref<1x2xf32, #tpu.memory_space<vmem>>, %arg15: memref<32x32xbf16, #tpu.memory_space<vmem>>, %arg16: memref<1x32xf32, #tpu.memory_space<vmem>>, %arg17: memref<32x32xbf16, #tpu.memory_space<vmem>>, %arg18: memref<1x32xf32, #tpu.memory_space<vmem>>, %arg19: memref<32x8xbf16, #tpu.memory_space<vmem>>, %arg20: memref<1x8xf32, #tpu.memory_space<vmem>>, %arg21: memref<8x128xf32, #tpu.memory_space<vmem>>) attributes {dimension_semantics = [], scalar_prefetch = 0 : i64, scratch_operands = 0 : i64, tpu.core_type = #tpu.core_type<tc>} {
    %c0 = arith.constant 0 : index
    %c0_0 = arith.constant 0 : index
    %0 = vector.load %arg2[%c0, %c0_0] : memref<8x32xf32, #tpu.memory_space<vmem>>, vector<8x32xf32>
    %c0_1 = arith.constant 0 : index
    %c0_2 = arith.constant 0 : index
    %1 = vector.load %arg3[%c0_1, %c0_2] : memref<8x32xf32, #tpu.memory_space<vmem>>, vector<8x32xf32>
    %c0_3 = arith.constant 0 : index
    %c0_4 = arith.constant 0 : index
    %2 = vector.load %arg4[%c0_3, %c0_4] : memref<32x8xbf16, #tpu.memory_space<vmem>>, vector<32x8xbf16>
    %3 = arith.extf %2 : vector<32x8xbf16> to vector<32x8xf32>
    %cst = arith.constant dense<0.000000e+00> : vector<8x8xf32>
    %4 = tpu.matmul %0, %3, %cst {dimension_numbers = #tpu.dot_dimension_numbers<[1], [0], [0], [1], [0, 0, 1, 1], [], []>} : vector<8x32xf32>, vector<32x8xf32>, vector<8x8xf32> -> vector<8x8xf32>
    %c0_5 = arith.constant 0 : index
    %c0_6 = arith.constant 0 : index
    %5 = vector.load %arg7[%c0_5, %c0_6] : memref<32x64xbf16, #tpu.memory_space<vmem>>, vector<32x64xbf16>
    %6 = arith.extf %5 : vector<32x64xbf16> to vector<32x64xf32>
    %cst_7 = arith.constant dense<0.000000e+00> : vector<8x64xf32>
    %7 = tpu.matmul %1, %6, %cst_7 {dimension_numbers = #tpu.dot_dimension_numbers<[1], [0], [0], [1], [0, 0, 1, 1], [], []>} : vector<8x32xf32>, vector<32x64xf32>, vector<8x64xf32> -> vector<8x64xf32>
    %c0_8 = arith.constant 0 : index
    %c0_9 = arith.constant 0 : index
    %8 = vector.load %arg8[%c0_8, %c0_9] : memref<1x64xf32, #tpu.memory_space<vmem>>, vector<1x64xf32>
    %9 = vector.broadcast %8 : vector<1x64xf32> to vector<8x64xf32>
    %10 = arith.addf %7, %9 : vector<8x64xf32>
    %cst_10 = arith.constant 0.000000e+00 : f32
    %11 = vector.broadcast %cst_10 : f32 to vector<8x64xf32>
    %12 = arith.maximumf %10, %11 : vector<8x64xf32>
    %13 = vector.extract_strided_slice %12 {offsets = [0, 0], sizes = [8, 32], strides = [1, 1]} : vector<8x64xf32> to vector<8x32xf32>
    %14 = vector.extract_strided_slice %12 {offsets = [0, 32], sizes = [8, 32], strides = [1, 1]} : vector<8x64xf32> to vector<8x32xf32>
    %c0_11 = arith.constant 0 : index
    %c0_12 = arith.constant 0 : index
    %15 = vector.load %arg9[%c0_11, %c0_12] : memref<32x32xbf16, #tpu.memory_space<vmem>>, vector<32x32xbf16>
    %16 = arith.extf %15 : vector<32x32xbf16> to vector<32x32xf32>
    %cst_13 = arith.constant dense<0.000000e+00> : vector<8x32xf32>
    %17 = tpu.matmul %13, %16, %cst_13 {dimension_numbers = #tpu.dot_dimension_numbers<[1], [0], [0], [1], [0, 0, 1, 1], [], []>} : vector<8x32xf32>, vector<32x32xf32>, vector<8x32xf32> -> vector<8x32xf32>
    %c0_14 = arith.constant 0 : index
    %c0_15 = arith.constant 0 : index
    %18 = vector.load %arg10[%c0_14, %c0_15] : memref<1x32xf32, #tpu.memory_space<vmem>>, vector<1x32xf32>
    %19 = vector.broadcast %18 : vector<1x32xf32> to vector<8x32xf32>
    %20 = arith.addf %17, %19 : vector<8x32xf32>
    %cst_16 = arith.constant 0.000000e+00 : f32
    %21 = vector.broadcast %cst_16 : f32 to vector<8x32xf32>
    %22 = arith.maximumf %20, %21 : vector<8x32xf32>
    %c0_17 = arith.constant 0 : index
    %c0_18 = arith.constant 0 : index
    %23 = vector.load %arg11[%c0_17, %c0_18] : memref<32x32xbf16, #tpu.memory_space<vmem>>, vector<32x32xbf16>
    %24 = arith.extf %23 : vector<32x32xbf16> to vector<32x32xf32>
    %cst_19 = arith.constant dense<0.000000e+00> : vector<8x32xf32>
    %25 = tpu.matmul %22, %24, %cst_19 {dimension_numbers = #tpu.dot_dimension_numbers<[1], [0], [0], [1], [0, 0, 1, 1], [], []>} : vector<8x32xf32>, vector<32x32xf32>, vector<8x32xf32> -> vector<8x32xf32>
    %c0_20 = arith.constant 0 : index
    %c0_21 = arith.constant 0 : index
    %26 = vector.load %arg12[%c0_20, %c0_21] : memref<1x32xf32, #tpu.memory_space<vmem>>, vector<1x32xf32>
    %27 = vector.broadcast %26 : vector<1x32xf32> to vector<8x32xf32>
    %28 = arith.addf %25, %27 : vector<8x32xf32>
    %cst_22 = arith.constant 0.000000e+00 : f32
    %29 = vector.broadcast %cst_22 : f32 to vector<8x32xf32>
    %30 = arith.maximumf %28, %29 : vector<8x32xf32>
    %c0_23 = arith.constant 0 : index
    %c0_24 = arith.constant 0 : index
    %31 = vector.load %arg13[%c0_23, %c0_24] : memref<32x2xbf16, #tpu.memory_space<vmem>>, vector<32x2xbf16>
    %32 = arith.extf %31 : vector<32x2xbf16> to vector<32x2xf32>
    %cst_25 = arith.constant dense<0.000000e+00> : vector<8x2xf32>
    %33 = tpu.matmul %30, %32, %cst_25 {dimension_numbers = #tpu.dot_dimension_numbers<[1], [0], [0], [1], [0, 0, 1, 1], [], []>} : vector<8x32xf32>, vector<32x2xf32>, vector<8x2xf32> -> vector<8x2xf32>
    %c0_26 = arith.constant 0 : index
    %c0_27 = arith.constant 0 : index
    %34 = vector.load %arg14[%c0_26, %c0_27] : memref<1x2xf32, #tpu.memory_space<vmem>>, vector<1x2xf32>
    %35 = vector.broadcast %34 : vector<1x2xf32> to vector<8x2xf32>
    %36 = arith.addf %33, %35 : vector<8x2xf32>
    %c0_28 = arith.constant 0 : index
    %c0_29 = arith.constant 0 : index
    %37 = vector.load %arg15[%c0_28, %c0_29] : memref<32x32xbf16, #tpu.memory_space<vmem>>, vector<32x32xbf16>
    %38 = arith.extf %37 : vector<32x32xbf16> to vector<32x32xf32>
    %cst_30 = arith.constant dense<0.000000e+00> : vector<8x32xf32>
    %39 = tpu.matmul %14, %38, %cst_30 {dimension_numbers = #tpu.dot_dimension_numbers<[1], [0], [0], [1], [0, 0, 1, 1], [], []>} : vector<8x32xf32>, vector<32x32xf32>, vector<8x32xf32> -> vector<8x32xf32>
    %c0_31 = arith.constant 0 : index
    %c0_32 = arith.constant 0 : index
    %40 = vector.load %arg16[%c0_31, %c0_32] : memref<1x32xf32, #tpu.memory_space<vmem>>, vector<1x32xf32>
    %41 = vector.broadcast %40 : vector<1x32xf32> to vector<8x32xf32>
    %42 = arith.addf %39, %41 : vector<8x32xf32>
    %cst_33 = arith.constant 0.000000e+00 : f32
    %43 = vector.broadcast %cst_33 : f32 to vector<8x32xf32>
    %44 = arith.maximumf %42, %43 : vector<8x32xf32>
    %c0_34 = arith.constant 0 : index
    %c0_35 = arith.constant 0 : index
    %45 = vector.load %arg17[%c0_34, %c0_35] : memref<32x32xbf16, #tpu.memory_space<vmem>>, vector<32x32xbf16>
    %46 = arith.extf %45 : vector<32x32xbf16> to vector<32x32xf32>
    %cst_36 = arith.constant dense<0.000000e+00> : vector<8x32xf32>
    %47 = tpu.matmul %44, %46, %cst_36 {dimension_numbers = #tpu.dot_dimension_numbers<[1], [0], [0], [1], [0, 0, 1, 1], [], []>} : vector<8x32xf32>, vector<32x32xf32>, vector<8x32xf32> -> vector<8x32xf32>
    %c0_37 = arith.constant 0 : index
    %c0_38 = arith.constant 0 : index
    %48 = vector.load %arg18[%c0_37, %c0_38] : memref<1x32xf32, #tpu.memory_space<vmem>>, vector<1x32xf32>
    %49 = vector.broadcast %48 : vector<1x32xf32> to vector<8x32xf32>
    %50 = arith.addf %47, %49 : vector<8x32xf32>
    %cst_39 = arith.constant 0.000000e+00 : f32
    %51 = vector.broadcast %cst_39 : f32 to vector<8x32xf32>
    %52 = arith.maximumf %50, %51 : vector<8x32xf32>
    %c0_40 = arith.constant 0 : index
    %c0_41 = arith.constant 0 : index
    %53 = vector.load %arg19[%c0_40, %c0_41] : memref<32x8xbf16, #tpu.memory_space<vmem>>, vector<32x8xbf16>
    %54 = arith.extf %53 : vector<32x8xbf16> to vector<32x8xf32>
    %cst_42 = arith.constant dense<0.000000e+00> : vector<8x8xf32>
    %55 = tpu.matmul %52, %54, %cst_42 {dimension_numbers = #tpu.dot_dimension_numbers<[1], [0], [0], [1], [0, 0, 1, 1], [], []>} : vector<8x32xf32>, vector<32x8xf32>, vector<8x8xf32> -> vector<8x8xf32>
    %c0_43 = arith.constant 0 : index
    %c0_44 = arith.constant 0 : index
    %56 = vector.load %arg20[%c0_43, %c0_44] : memref<1x8xf32, #tpu.memory_space<vmem>>, vector<1x8xf32>
    %57 = vector.broadcast %56 : vector<1x8xf32> to vector<8x8xf32>
    %58 = arith.addf %55, %57 : vector<8x8xf32>
    %cst_45 = arith.constant 1.000000e-01 : f32
    %59 = vector.broadcast %cst_45 : f32 to vector<8x2xf32>
    %60 = arith.mulf %36, %59 : vector<8x2xf32>
    %cst_46 = arith.constant dense<0xFF800000> : vector<8xf32>
    %61 = vector.multi_reduction <maximumf>, %60, %cst_46 [1] : vector<8x2xf32> to vector<8xf32>
    %62 = vector.shape_cast %61 : vector<8xf32> to vector<8x1xf32>
    %63 = vector.broadcast %62 : vector<8x1xf32> to vector<8x2xf32>
    %64 = arith.subf %60, %63 : vector<8x2xf32>
    %65 = math.exp %64 : vector<8x2xf32>
    %cst_47 = arith.constant dense<0.000000e+00> : vector<8xf32>
    %66 = vector.multi_reduction <add>, %65, %cst_47 [1] : vector<8x2xf32> to vector<8xf32>
    %67 = vector.shape_cast %66 : vector<8xf32> to vector<8x1xf32>
    %68 = vector.broadcast %67 : vector<8x1xf32> to vector<8x2xf32>
    %69 = arith.divf %65, %68 : vector<8x2xf32>
    %c0_48 = arith.constant 0 : index
    %c0_49 = arith.constant 0 : index
    %70 = memref.load %arg0[%c0_48, %c0_49] : memref<1x1xf32, #tpu.memory_space<smem>>
    %71 = vector.broadcast %70 : f32 to vector<8x2xf32>
    %72 = arith.mulf %69, %71 : vector<8x2xf32>
    %cst_50 = arith.constant 1.000000e-01 : f32
    %73 = vector.broadcast %cst_50 : f32 to vector<8x8xf32>
    %74 = arith.mulf %58, %73 : vector<8x8xf32>
    %cst_51 = arith.constant 0.000000e+00 : f32
    %75 = vector.broadcast %cst_51 : f32 to vector<8x8xf32>
    %c0_52 = arith.constant 0 : index
    %c0_53 = arith.constant 0 : index
    %76 = vector.load %arg6[%c0_52, %c0_53] : memref<2x8xf32, #tpu.memory_space<vmem>>, vector<1x8xf32>
    %cst_54 = arith.constant 0.000000e+00 : f32
    %77 = vector.broadcast %cst_54 : f32 to vector<1x8xf32>
    %78 = arith.cmpf ogt, %76, %77 : vector<1x8xf32>
    %cst_55 = arith.constant -1.000000e+30 : f32
    %79 = vector.shape_cast %78 : vector<1x8xi1> to vector<1x8xi1>
    %80 = vector.broadcast %79 : vector<1x8xi1> to vector<8x8xi1>
    %81 = vector.broadcast %cst_55 : f32 to vector<8x8xf32>
    %82 = arith.select %80, %74, %81 : vector<8x8xi1>, vector<8x8xf32>
    %cst_56 = arith.constant dense<0xFF800000> : vector<8xf32>
    %83 = vector.multi_reduction <maximumf>, %82, %cst_56 [1] : vector<8x8xf32> to vector<8xf32>
    %84 = vector.shape_cast %83 : vector<8xf32> to vector<8x1xf32>
    %85 = vector.shape_cast %78 : vector<1x8xi1> to vector<1x8xi1>
    %86 = vector.broadcast %85 : vector<1x8xi1> to vector<8x8xi1>
    %87 = vector.shape_cast %84 : vector<8x1xf32> to vector<8x1xf32>
    %88 = vector.broadcast %87 : vector<8x1xf32> to vector<8x8xf32>
    %89 = arith.select %86, %88, %75 : vector<8x8xi1>, vector<8x8xf32>
    %c1 = arith.constant 1 : index
    %c0_57 = arith.constant 0 : index
    %90 = vector.load %arg6[%c1, %c0_57] : memref<2x8xf32, #tpu.memory_space<vmem>>, vector<1x8xf32>
    %cst_58 = arith.constant 0.000000e+00 : f32
    %91 = vector.broadcast %cst_58 : f32 to vector<1x8xf32>
    %92 = arith.cmpf ogt, %90, %91 : vector<1x8xf32>
    %cst_59 = arith.constant -1.000000e+30 : f32
    %93 = vector.shape_cast %92 : vector<1x8xi1> to vector<1x8xi1>
    %94 = vector.broadcast %93 : vector<1x8xi1> to vector<8x8xi1>
    %95 = vector.broadcast %cst_59 : f32 to vector<8x8xf32>
    %96 = arith.select %94, %74, %95 : vector<8x8xi1>, vector<8x8xf32>
    %cst_60 = arith.constant dense<0xFF800000> : vector<8xf32>
    %97 = vector.multi_reduction <maximumf>, %96, %cst_60 [1] : vector<8x8xf32> to vector<8xf32>
    %98 = vector.shape_cast %97 : vector<8xf32> to vector<8x1xf32>
    %99 = vector.shape_cast %92 : vector<1x8xi1> to vector<1x8xi1>
    %100 = vector.broadcast %99 : vector<1x8xi1> to vector<8x8xi1>
    %101 = vector.shape_cast %98 : vector<8x1xf32> to vector<8x1xf32>
    %102 = vector.broadcast %101 : vector<8x1xf32> to vector<8x8xf32>
    %103 = arith.select %100, %102, %89 : vector<8x8xi1>, vector<8x8xf32>
    %104 = arith.subf %74, %103 : vector<8x8xf32>
    %105 = math.exp %104 : vector<8x8xf32>
    %cst_61 = arith.constant 1.000000e+00 : f32
    %106 = vector.broadcast %cst_61 : f32 to vector<8x8xf32>
    %c0_62 = arith.constant 0 : index
    %c0_63 = arith.constant 0 : index
    %107 = vector.load %arg6[%c0_62, %c0_63] : memref<2x8xf32, #tpu.memory_space<vmem>>, vector<1x8xf32>
    %cst_64 = arith.constant 0.000000e+00 : f32
    %108 = vector.broadcast %cst_64 : f32 to vector<1x8xf32>
    %109 = arith.cmpf ogt, %107, %108 : vector<1x8xf32>
    %cst_65 = arith.constant 0.000000e+00 : f32
    %110 = vector.shape_cast %109 : vector<1x8xi1> to vector<1x8xi1>
    %111 = vector.broadcast %110 : vector<1x8xi1> to vector<8x8xi1>
    %112 = vector.broadcast %cst_65 : f32 to vector<8x8xf32>
    %113 = arith.select %111, %105, %112 : vector<8x8xi1>, vector<8x8xf32>
    %cst_66 = arith.constant dense<0.000000e+00> : vector<8xf32>
    %114 = vector.multi_reduction <add>, %113, %cst_66 [1] : vector<8x8xf32> to vector<8xf32>
    %115 = vector.shape_cast %114 : vector<8xf32> to vector<8x1xf32>
    %116 = vector.shape_cast %109 : vector<1x8xi1> to vector<1x8xi1>
    %117 = vector.broadcast %116 : vector<1x8xi1> to vector<8x8xi1>
    %118 = vector.shape_cast %115 : vector<8x1xf32> to vector<8x1xf32>
    %119 = vector.broadcast %118 : vector<8x1xf32> to vector<8x8xf32>
    %120 = arith.select %117, %119, %106 : vector<8x8xi1>, vector<8x8xf32>
    %c1_67 = arith.constant 1 : index
    %c0_68 = arith.constant 0 : index
    %121 = vector.load %arg6[%c1_67, %c0_68] : memref<2x8xf32, #tpu.memory_space<vmem>>, vector<1x8xf32>
    %cst_69 = arith.constant 0.000000e+00 : f32
    %122 = vector.broadcast %cst_69 : f32 to vector<1x8xf32>
    %123 = arith.cmpf ogt, %121, %122 : vector<1x8xf32>
    %cst_70 = arith.constant 0.000000e+00 : f32
    %124 = vector.shape_cast %123 : vector<1x8xi1> to vector<1x8xi1>
    %125 = vector.broadcast %124 : vector<1x8xi1> to vector<8x8xi1>
    %126 = vector.broadcast %cst_70 : f32 to vector<8x8xf32>
    %127 = arith.select %125, %105, %126 : vector<8x8xi1>, vector<8x8xf32>
    %cst_71 = arith.constant dense<0.000000e+00> : vector<8xf32>
    %128 = vector.multi_reduction <add>, %127, %cst_71 [1] : vector<8x8xf32> to vector<8xf32>
    %129 = vector.shape_cast %128 : vector<8xf32> to vector<8x1xf32>
    %130 = vector.shape_cast %123 : vector<1x8xi1> to vector<1x8xi1>
    %131 = vector.broadcast %130 : vector<1x8xi1> to vector<8x8xi1>
    %132 = vector.shape_cast %129 : vector<8x1xf32> to vector<8x1xf32>
    %133 = vector.broadcast %132 : vector<8x1xf32> to vector<8x8xf32>
    %134 = arith.select %131, %133, %120 : vector<8x8xi1>, vector<8x8xf32>
    %135 = arith.divf %105, %134 : vector<8x8xf32>
    %c0_72 = arith.constant 0 : index
    %c0_73 = arith.constant 0 : index
    %136 = memref.load %arg1[%c0_72, %c0_73] : memref<1x1xf32, #tpu.memory_space<smem>>
    %137 = vector.broadcast %136 : f32 to vector<8x8xf32>
    %138 = arith.mulf %135, %137 : vector<8x8xf32>
    %139 = arith.mulf %4, %138 : vector<8x8xf32>
    %c0_74 = arith.constant 0 : index
    %c0_75 = arith.constant 0 : index
    %140 = vector.load %arg5[%c0_74, %c0_75] : memref<8x2xf32, #tpu.memory_space<vmem>>, vector<8x2xf32>
    %cst_76 = arith.constant dense<0.000000e+00> : vector<8x2xf32>
    %141 = tpu.matmul %139, %140, %cst_76 {dimension_numbers = #tpu.dot_dimension_numbers<[1], [0], [0], [1], [0, 0, 1, 1], [], []>} : vector<8x8xf32>, vector<8x2xf32>, vector<8x2xf32> -> vector<8x2xf32>
    %142 = arith.mulf %141, %72 : vector<8x2xf32>
    %cst_77 = arith.constant dense<0.000000e+00> : vector<8xf32>
    %143 = vector.multi_reduction <add>, %142, %cst_77 [1] : vector<8x2xf32> to vector<8xf32>
    %144 = vector.shape_cast %143 : vector<8xf32> to vector<8x1xf32>
    %cst_78 = arith.constant 0.000000e+00 : f32
    %145 = vector.broadcast %cst_78 : f32 to vector<8x128xf32>
    %c0_79 = arith.constant 0 : index
    %c0_80 = arith.constant 0 : index
    %146 = vector.load %arg21[%c0_79, %c0_80] : memref<8x128xf32, #tpu.memory_space<vmem>>, vector<8x128xf32>
    tpu.vector_store %arg21[%c0_79, %c0_80], %145 {strides = array<i32>} : memref<8x128xf32, #tpu.memory_space<vmem>>, vector<8x128xf32>,
    %c0_81 = arith.constant 0 : index
    %c0_82 = arith.constant 0 : index
    %147 = vector.load %arg21[%c0_81, %c0_82] : memref<8x128xf32, #tpu.memory_space<vmem>>, vector<8x8xf32>
    tpu.vector_store %arg21[%c0_81, %c0_82], %4 {strides = array<i32>} : memref<8x128xf32, #tpu.memory_space<vmem>>, vector<8x8xf32>,
    %c0_83 = arith.constant 0 : index
    %c8 = arith.constant 8 : index
    %148 = vector.load %arg21[%c0_83, %c8] : memref<8x128xf32, #tpu.memory_space<vmem>>, vector<8x8xf32>
    tpu.vector_store %arg21[%c0_83, %c8], %58 {strides = array<i32>} : memref<8x128xf32, #tpu.memory_space<vmem>>, vector<8x8xf32>,
    %c0_84 = arith.constant 0 : index
    %c16 = arith.constant 16 : index
    %149 = vector.load %arg21[%c0_84, %c16] : memref<8x128xf32, #tpu.memory_space<vmem>>, vector<8x2xf32>
    tpu.vector_store %arg21[%c0_84, %c16], %72 {strides = array<i32>} : memref<8x128xf32, #tpu.memory_space<vmem>>, vector<8x2xf32>,
    %c0_85 = arith.constant 0 : index
    %c18 = arith.constant 18 : index
    %150 = vector.load %arg21[%c0_85, %c18] : memref<8x128xf32, #tpu.memory_space<vmem>>, vector<8x8xf32>
    tpu.vector_store %arg21[%c0_85, %c18], %138 {strides = array<i32>} : memref<8x128xf32, #tpu.memory_space<vmem>>, vector<8x8xf32>,
    %c0_86 = arith.constant 0 : index
    %c26 = arith.constant 26 : index
    %151 = vector.load %arg21[%c0_86, %c26] : memref<8x128xf32, #tpu.memory_space<vmem>>, vector<8x2xf32>
    tpu.vector_store %arg21[%c0_86, %c26], %141 {strides = array<i32>} : memref<8x128xf32, #tpu.memory_space<vmem>>, vector<8x2xf32>,
    %c0_87 = arith.constant 0 : index
    %c28 = arith.constant 28 : index
    %152 = vector.load %arg21[%c0_87, %c28] : memref<8x128xf32, #tpu.memory_space<vmem>>, vector<8x1xf32>
    tpu.vector_store %arg21[%c0_87, %c28], %144 {strides = array<i32>} : memref<8x128xf32, #tpu.memory_space<vmem>>, vector<8x1xf32>,
    return
  }
}

</mosaic_0001>

<llo_original>
// kernel: tpu_custom_call.1
$region0: #{tpu_custom_call.1}
  #allocation0 [shape = 'u32[]', space=smem, size = 0x4, offset = 0x4, fixed_abs, tag = 'smem constant byte address 0x4 - core index']
  #allocation1 [shape = 'u32[144,128]{1,0:T(1,128)}', space=vmem, size = 0x12000, scoped, tag = 'internal scratch']
  #allocation2 [shape = 'f32[1,1]{1,0:T(1,128)S(6)}', space=smem, size = 0x200, scoped, tag = 'scoped memory for tpu_custom_call.1']
  #allocation3 [shape = 'f32[1,1]{1,0:T(1,128)S(6)}', space=smem, size = 0x200, scoped, tag = 'scoped memory for tpu_custom_call.1']
  %s0 = inlined_call_operand.<no memory space> [shape: f32[1,1], index: 0, kind: input, shape index: {}]
  %s1 = inlined_call_operand.<no memory space> [shape: f32[1,1], index: 1, kind: input, shape index: {}]
  %s2 = inlined_call_operand.hbm [shape: f32[8,32], index: 2, kind: input, shape index: {}]
  %s3 = inlined_call_operand.hbm [shape: f32[8,32], index: 3, kind: input, shape index: {}]
  %s4 = inlined_call_operand.vmem [shape: bf16[32,8], index: 4, kind: input, shape index: {}]
  %s5 = inlined_call_operand.vmem [shape: f32[8,2], index: 5, kind: input, shape index: {}]
  %s6 = inlined_call_operand.vmem [shape: f32[2,8], index: 6, kind: input, shape index: {}]
  %s7 = inlined_call_operand.vmem [shape: bf16[32,64], index: 7, kind: input, shape index: {}]
  %s8 = inlined_call_operand.vmem [shape: f32[1,64], index: 8, kind: input, shape index: {}]
  %s9 = inlined_call_operand.vmem [shape: bf16[32,32], index: 9, kind: input, shape index: {}]
  %s10 = inlined_call_operand.vmem [shape: f32[1,32], index: 10, kind: input, shape index: {}]
  %s11 = inlined_call_operand.vmem [shape: bf16[32,32], index: 11, kind: input, shape index: {}]
  %s12 = inlined_call_operand.vmem [shape: f32[1,32], index: 12, kind: input, shape index: {}]
  %s13 = inlined_call_operand.vmem [shape: bf16[32,2], index: 13, kind: input, shape index: {}]
  %s14 = inlined_call_operand.vmem [shape: f32[1,2], index: 14, kind: input, shape index: {}]
  %s15 = inlined_call_operand.vmem [shape: bf16[32,32], index: 15, kind: input, shape index: {}]
  %s16 = inlined_call_operand.vmem [shape: f32[1,32], index: 16, kind: input, shape index: {}]
  %s17 = inlined_call_operand.vmem [shape: bf16[32,32], index: 17, kind: input, shape index: {}]
  %s18 = inlined_call_operand.vmem [shape: f32[1,32], index: 18, kind: input, shape index: {}]
  %s19 = inlined_call_operand.vmem [shape: bf16[32,8], index: 19, kind: input, shape index: {}]
  %s20 = inlined_call_operand.vmem [shape: f32[1,8], index: 20, kind: input, shape index: {}]
  %s21 = inlined_call_operand.hbm [shape: f32[8,128], index: 21, kind: output, shape index: {}]
  %s22 = sld [smem:[#allocation0]]
  $region102: #{tpu_custom_call.1} parent=0
    _
  %s24 = ssub.s32 1, %s22
  %s25 = scalar_select 0, %s24, %s22
  %26 = sst [smem:[#allocation2]] %s0
  %27 = sst [smem:[#allocation3]] %s1
  $region1: #{tpu_custom_call.1} parent=0
    #allocation4 [shape = 'u8[4096]{0}', space=vmem, size = 0x1000, scoped, tag = 'input window, operand 2, single buffered']
    #allocation5 [shape = 's32[1]{0}', space=sflag, size = 0x4, scoped, tag = 'scoped memory for tpu_custom_call.1']
    #allocation6 [shape = 's32[1]{0}', space=sflag, size = 0x4, scoped, tag = 'scoped memory for tpu_custom_call.1']
    #allocation7 [shape = 'u8[4096]{0}', space=vmem, size = 0x1000, scoped, tag = 'input window, operand 3, single buffered']
    #allocation8 [shape = 's32[1]{0}', space=sflag, size = 0x4, scoped, tag = 'scoped memory for tpu_custom_call.1']
    #allocation9 [shape = 'u8[4096]{0}', space=vmem, size = 0x1000, scoped, tag = 'output window, operand 0, single buffered']
    %28 = vsyncpa [#allocation5], 0
    %29 = vsyncpa [#allocation8], 0
    %30 = vsyncpa [#allocation6], 0
    // Predicated region
    $region2: #{tpu_custom_call.1} parent=1 // pred_check
      _
    $region3: #{tpu_custom_call.1} parent=1 // pred_check_branch
      %32 = sbr.rel (0) target = $region5
    $region4: #{tpu_custom_call.1} parent=1 // pred_region
      _
    $region5: #{tpu_custom_call.1} parent=1 // pred_fallthru
      _
    // Predicated region
    $region6: #{tpu_custom_call.1} parent=1 // pred_check
      _
    $region7: #{tpu_custom_call.1} parent=1 // pred_check_branch
      %34 = sbr.rel (0) target = $region9
    $region8: #{tpu_custom_call.1} parent=1 // pred_region
      _
    $region9: #{tpu_custom_call.1} parent=1 // pred_fallthru
      _
    // Predicated region
    $region10: #{tpu_custom_call.1} parent=1 // pred_check
      _
    $region11: #{tpu_custom_call.1} parent=1 // pred_check_branch
      %36 = sbr.rel (0) target = $region13
    $region12: #{tpu_custom_call.1} parent=1 // pred_region
      %s38 = ssub.s32 128, 128
      %39 = vsyncadd [#allocation5], %s38
      %s41 = sshll.u32 [#allocation4], 4
      %s42 = int_to_ptr.vmem [resolvable:$true] %s41
      %44 = dma.hbm_to_vmem [thread:$0]  %s2, 128, %s42, [#allocation5]
    $region13: #{tpu_custom_call.1} parent=1 // pred_fallthru
      _
    // Predicated region
    $region14: #{tpu_custom_call.1} parent=1 // pred_check
      _
    $region15: #{tpu_custom_call.1} parent=1 // pred_check_branch
      %46 = sbr.rel (0) target = $region17
    $region16: #{tpu_custom_call.1} parent=1 // pred_region
      %s48 = ssub.s32 128, 128
      %49 = vsyncadd [#allocation8], %s48
      %s51 = sshll.u32 [#allocation7], 4
      %s52 = int_to_ptr.vmem [resolvable:$true] %s51
      %54 = dma.hbm_to_vmem [thread:$0]  %s3, 128, %s52, [#allocation8]
    $region17: #{tpu_custom_call.1} parent=1 // pred_fallthru
      _
    // Predicated region
    $region18: #{tpu_custom_call.1} parent=1 // pred_check
      _
    $region19: #{tpu_custom_call.1} parent=1 // pred_check_branch
      %56 = sbr.rel (0) target = $region21
    $region20: #{tpu_custom_call.1} parent=1 // pred_region
      _
    $region21: #{tpu_custom_call.1} parent=1 // pred_fallthru
      _
    // Predicated region
    $region22: #{tpu_custom_call.1} parent=1 // pred_check
      _
    $region23: #{tpu_custom_call.1} parent=1 // pred_check_branch
      %58 = sbr.rel (0) target = $region25
    $region24: #{tpu_custom_call.1} parent=1 // pred_region
      _
    $region25: #{tpu_custom_call.1} parent=1 // pred_fallthru
      _
    // Predicated region
    $region26: #{tpu_custom_call.1} parent=1 // pred_check
      _
    $region27: #{tpu_custom_call.1} parent=1 // pred_check_branch
      %60 = sbr.rel (0) target = $region29
    $region28: #{tpu_custom_call.1} parent=1 // pred_region
      _
    $region29: #{tpu_custom_call.1} parent=1 // pred_fallthru
      _
    // Predicated region
    $region30: #{tpu_custom_call.1} parent=1 // pred_check
      _
    $region31: #{tpu_custom_call.1} parent=1 // pred_check_branch
      %62 = sbr.rel (0) target = $region33
    $region32: #{tpu_custom_call.1} parent=1 // pred_region
      _
    $region33: #{tpu_custom_call.1} parent=1 // pred_fallthru
      _
    // Predicated region
    $region34: #{tpu_custom_call.1} parent=1 // pred_check
      _
    $region35: #{tpu_custom_call.1} parent=1 // pred_check_branch
      %64 = sbr.rel (0) target = $region37
    $region36: #{tpu_custom_call.1} parent=1 // pred_region
      _
    $region37: #{tpu_custom_call.1} parent=1 // pred_fallthru
      _
    // Predicated region
    $region38: #{tpu_custom_call.1} parent=1 // pred_check
      _
    $region39: #{tpu_custom_call.1} parent=1 // pred_check_branch
      %66 = sbr.rel (0) target = $region41
    $region40: #{tpu_custom_call.1} parent=1 // pred_region
      _
    $region41: #{tpu_custom_call.1} parent=1 // pred_fallthru
      _
    // Predicated region
    $region42: #{tpu_custom_call.1} parent=1 // pred_check
      _
    $region43: #{tpu_custom_call.1} parent=1 // pred_check_branch
      %68 = sbr.rel (0) target = $region45
    $region44: #{tpu_custom_call.1} parent=1 // pred_region
      _
    $region45: #{tpu_custom_call.1} parent=1 // pred_fallthru
      _
    // Predicated region
    $region46: #{tpu_custom_call.1} parent=1 // pred_check
      _
    $region47: #{tpu_custom_call.1} parent=1 // pred_check_branch
      %70 = sbr.rel (0) target = $region49
    $region48: #{tpu_custom_call.1} parent=1 // pred_region
      _
    $region49: #{tpu_custom_call.1} parent=1 // pred_fallthru
      _
    // Predicated region
    $region50: #{tpu_custom_call.1} parent=1 // pred_check
      _
    $region51: #{tpu_custom_call.1} parent=1 // pred_check_branch
      %72 = sbr.rel (0) target = $region53
    $region52: #{tpu_custom_call.1} parent=1 // pred_region
      _
    $region53: #{tpu_custom_call.1} parent=1 // pred_fallthru
      _
    // Predicated region
    $region54: #{tpu_custom_call.1} parent=1 // pred_check
      _
    $region55: #{tpu_custom_call.1} parent=1 // pred_check_branch
      %74 = sbr.rel (0) target = $region57
    $region56: #{tpu_custom_call.1} parent=1 // pred_region
      _
    $region57: #{tpu_custom_call.1} parent=1 // pred_fallthru
      _
    // Predicated region
    $region58: #{tpu_custom_call.1} parent=1 // pred_check
      _
    $region59: #{tpu_custom_call.1} parent=1 // pred_check_branch
      %76 = sbr.rel (0) target = $region61
    $region60: #{tpu_custom_call.1} parent=1 // pred_region
      _
    $region61: #{tpu_custom_call.1} parent=1 // pred_fallthru
      _
    // Predicated region
    $region62: #{tpu_custom_call.1} parent=1 // pred_check
      _
    $region63: #{tpu_custom_call.1} parent=1 // pred_check_branch
      %78 = sbr.rel (0) target = $region65
    $region64: #{tpu_custom_call.1} parent=1 // pred_region
      _
    $region65: #{tpu_custom_call.1} parent=1 // pred_fallthru
      _
    // Predicated region
    $region66: #{tpu_custom_call.1} parent=1 // pred_check
      _
    $region67: #{tpu_custom_call.1} parent=1 // pred_check_branch
      %80 = sbr.rel (0) target = $region69
    $region68: #{tpu_custom_call.1} parent=1 // pred_region
      _
    $region69: #{tpu_custom_call.1} parent=1 // pred_fallthru
      _
    // Predicated region
    $region70: #{tpu_custom_call.1} parent=1 // pred_check
      _
    $region71: #{tpu_custom_call.1} parent=1 // pred_check_branch
      %82 = sbr.rel (0) target = $region73
    $region72: #{tpu_custom_call.1} parent=1 // pred_region
      _
    $region73: #{tpu_custom_call.1} parent=1 // pred_fallthru
      _
    // Predicated region
    $region74: #{tpu_custom_call.1} parent=1 // pred_check
      _
    $region75: #{tpu_custom_call.1} parent=1 // pred_check_branch
      %84 = sbr.rel (0) target = $region77
    $region76: #{tpu_custom_call.1} parent=1 // pred_region
      _
    $region77: #{tpu_custom_call.1} parent=1 // pred_fallthru
      _
    // Predicated region
    $region78: #{tpu_custom_call.1} parent=1 // pred_check
      _
    $region79: #{tpu_custom_call.1} parent=1 // pred_check_branch
      %86 = sbr.rel (0) target = $region81
    $region80: #{tpu_custom_call.1} parent=1 // pred_region
      _
    $region81: #{tpu_custom_call.1} parent=1 // pred_fallthru
      _
    // Predicated region
    $region82: #{tpu_custom_call.1} parent=1 // pred_check
      _
    $region83: #{tpu_custom_call.1} parent=1 // pred_check_branch
      %88 = sbr.rel (0) target = $region85
    $region84: #{tpu_custom_call.1} parent=1 // pred_region
      _
    $region85: #{tpu_custom_call.1} parent=1 // pred_fallthru
      _
    // Predicated region
    $region86: #{tpu_custom_call.1} parent=1 // pred_check
      _
    $region87: #{tpu_custom_call.1} parent=1 // pred_check_branch
      %90 = sbr.rel (0) target = $region89
    $region88: #{tpu_custom_call.1} parent=1 // pred_region
      %91 = dma.done [#allocation5], 128
    $region89: #{tpu_custom_call.1} parent=1 // pred_fallthru
      _
    // Predicated region
    $region90: #{tpu_custom_call.1} parent=1 // pred_check
      _
    $region91: #{tpu_custom_call.1} parent=1 // pred_check_branch
      %93 = sbr.rel (0) target = $region93
    $region92: #{tpu_custom_call.1} parent=1 // pred_region
      %94 = dma.done [#allocation8], 128
    $region93: #{tpu_custom_call.1} parent=1 // pred_fallthru
      _
    %v95 = vld [vmem:[#allocation4] sm:$0xff]
    %v96 = vld [vmem:[#allocation7] sm:$0xff]
    %v97 = vld [vmem:[%s4] sm:$0xf]
    %v98 = vld [vmem:[%s4 + $0x4] sm:$0xf]
    %v99 = vld [vmem:[%s4 + $0x8] sm:$0xf]
    %v100 = vld [vmem:[%s4 + $0xc] sm:$0xf]
    %v101 = vunpack.c.l.bf16 %v97
    %v102 = vunpack.c.l.bf16 %v98
    %v103 = vunpack.c.l.bf16 %v99
    %v104 = vunpack.c.l.bf16 %v100
    %vm105 = vcmask 261120
    %v107 = vsel %vm105, %v95, 0
    %109 = vmatprep.subr.mxu0 0.0
    %110 = vmatpush1.msra.mxu0 %v101
    %111 = vmatprep.subr.mxu0 0.0
    %112 = vmatpush1.msra.mxu0 %v102
    %113 = vmatprep.subr.mxu0 0.0
    %114 = vmatpush1.msra.mxu0 %v103
    %115 = vmatprep.subr.mxu0 0.0
    %116 = vmatpush1.msra.mxu0 %v104
    %117 = vmatprep.subr.mxu0 0.0
    %118 = vmatpush1.msra.mxu0 0.0
    %119 = vmatprep.subr.mxu0 0.0
    %120 = vmatpush1.msra.mxu0 0.0
    %121 = vmatprep.subr.mxu0 0.0
    %122 = vmatpush1.msra.mxu0 0.0
    %123 = vmatprep.subr.mxu0 0.0
    %124 = vmatpush1.msra.mxu0 0.0
    %125 = vmatprep.subr.mxu0 0.0
    %126 = vmatpush1.msra.mxu0 0.0
    %127 = vmatprep.subr.mxu0 0.0
    %128 = vmatpush1.msra.mxu0 0.0
    %129 = vmatprep.subr.mxu0 0.0
    %130 = vmatpush1.msra.mxu0 0.0
    %131 = vmatprep.subr.mxu0 0.0
    %132 = vmatpush1.msra.mxu0 0.0
    %133 = vmatprep.subr.mxu0 0.0
    %134 = vmatpush1.msra.mxu0 0.0
    %135 = vmatprep.subr.mxu0 0.0
    %136 = vmatpush1.msra.mxu0 0.0
    %137 = vmatprep.subr.mxu0 0.0
    %138 = vmatpush1.msra.mxu0 0.0
    %139 = vmatprep.subr.mxu0 0.0
    %140 = vmatpush1.msra.mxu0 0.0
    %141 = vmatprep.subr.mxu0 0.0
    %142 = vmatpush1.msra.mxu0 0.0
    %143 = vmatprep.subr.mxu0 0.0
    %144 = vmatpush1.msra.mxu0 0.0
    %145 = vmatprep.subr.mxu0 0.0
    %146 = vmatpush1.msra.mxu0 0.0
    %147 = vmatprep.subr.mxu0 0.0
    %148 = vmatpush1.msra.mxu0 0.0
    %149 = vmatprep.subr.mxu0 0.0
    %150 = vmatpush1.msra.mxu0 0.0
    %151 = vmatprep.subr.mxu0 0.0
    %152 = vmatpush1.msra.mxu0 0.0
    %153 = vmatprep.subr.mxu0 0.0
    %154 = vmatpush1.msra.mxu0 0.0
    %155 = vmatprep.subr.mxu0 0.0
    %156 = vmatpush1.msra.mxu0 0.0
    %157 = vmatprep.subr.mxu0 0.0
    %158 = vmatpush1.msra.mxu0 0.0
    %159 = vmatprep.subr.mxu0 0.0
    %160 = vmatpush1.msra.mxu0 0.0
    %161 = vmatprep.subr.mxu0 0.0
    %162 = vmatpush1.msra.mxu0 0.0
    %163 = vmatprep.subr.mxu0 0.0
    %164 = vmatpush1.msra.mxu0 0.0
    %165 = vmatprep.subr.mxu0 0.0
    %166 = vmatpush1.msra.mxu0 0.0
    %167 = vmatprep.subr.mxu0 0.0
    %168 = vmatpush1.msra.mxu0 0.0
    %169 = vmatprep.subr.mxu0 0.0
    %170 = vmatpush1.msra.mxu0 0.0
    %171 = vmatprep.subr.mxu0 0.0
    %172 = vmatpush1.msra.mxu0 0.0
    %173 = vmatprep.mubr.f32.mxu0 0.0
    %174 = vmatmul.mubr.f32.gmra.mrb[0].mxu0 %v107
    %v175 = vpop.f32.mrb[0].mxu0
    %v176 = vadd.f32 0.0, %v175
    %v177 = vpop.f32.mrb[0].mxu0
    %178 = vdwg.mxu0
    %v179 = vld [vmem:[%s7] sm:$0xf]
    %v180 = vld [vmem:[%s7 + $0x4] sm:$0xf]
    %v181 = vld [vmem:[%s7 + $0x8] sm:$0xf]
    %v182 = vld [vmem:[%s7 + $0xc] sm:$0xf]
    %v183 = vunpack.c.l.bf16 %v179
    %v184 = vunpack.c.l.bf16 %v180
    %v185 = vunpack.c.l.bf16 %v181
    %v186 = vunpack.c.l.bf16 %v182
    %v187 = vld [vmem:[%s8] sm:$0x1]
    %v189 = vlaneseq
    %v190 = vshrl.u32 %v189, 7
    %v191 = vsub.s32 0, %v190
    %v192 = vrot.slane %v187, %v191
    %v195 = vsel %vm105, %v96, 0
    %197 = vmatprep.subr.mxu0 0.0
    %198 = vmatpush1.msra.mxu0 %v183
    %199 = vmatprep.subr.mxu0 0.0
    %200 = vmatpush1.msra.mxu0 %v184
    %201 = vmatprep.subr.mxu0 0.0
    %202 = vmatpush1.msra.mxu0 %v185
    %203 = vmatprep.subr.mxu0 0.0
    %204 = vmatpush1.msra.mxu0 %v186
    %205 = vmatprep.subr.mxu0 0.0
    %206 = vmatpush1.msra.mxu0 0.0
    %207 = vmatprep.subr.mxu0 0.0
    %208 = vmatpush1.msra.mxu0 0.0
    %209 = vmatprep.subr.mxu0 0.0
    %210 = vmatpush1.msra.mxu0 0.0
    %211 = vmatprep.subr.mxu0 0.0
    %212 = vmatpush1.msra.mxu0 0.0
    %213 = vmatprep.subr.mxu0 0.0
    %214 = vmatpush1.msra.mxu0 0.0
    %215 = vmatprep.subr.mxu0 0.0
    %216 = vmatpush1.msra.mxu0 0.0
    %217 = vmatprep.subr.mxu0 0.0
    %218 = vmatpush1.msra.mxu0 0.0
    %219 = vmatprep.subr.mxu0 0.0
    %220 = vmatpush1.msra.mxu0 0.0
    %221 = vmatprep.subr.mxu0 0.0
    %222 = vmatpush1.msra.mxu0 0.0
    %223 = vmatprep.subr.mxu0 0.0
    %224 = vmatpush1.msra.mxu0 0.0
    %225 = vmatprep.subr.mxu0 0.0
    %226 = vmatpush1.msra.mxu0 0.0
    %227 = vmatprep.subr.mxu0 0.0
    %228 = vmatpush1.msra.mxu0 0.0
    %229 = vmatprep.subr.mxu0 0.0
    %230 = vmatpush1.msra.mxu0 0.0
    %231 = vmatprep.subr.mxu0 0.0
    %232 = vmatpush1.msra.mxu0 0.0
    %233 = vmatprep.subr.mxu0 0.0
    %234 = vmatpush1.msra.mxu0 0.0
    %235 = vmatprep.subr.mxu0 0.0
    %236 = vmatpush1.msra.mxu0 0.0
    %237 = vmatprep.subr.mxu0 0.0
    %238 = vmatpush1.msra.mxu0 0.0
    %239 = vmatprep.subr.mxu0 0.0
    %240 = vmatpush1.msra.mxu0 0.0
    %241 = vmatprep.subr.mxu0 0.0
    %242 = vmatpush1.msra.mxu0 0.0
    %243 = vmatprep.subr.mxu0 0.0
    %244 = vmatpush1.msra.mxu0 0.0
    %245 = vmatprep.subr.mxu0 0.0
    %246 = vmatpush1.msra.mxu0 0.0
    %247 = vmatprep.subr.mxu0 0.0
    %248 = vmatpush1.msra.mxu0 0.0
    %249 = vmatprep.subr.mxu0 0.0
    %250 = vmatpush1.msra.mxu0 0.0
    %251 = vmatprep.subr.mxu0 0.0
    %252 = vmatpush1.msra.mxu0 0.0
    %253 = vmatprep.subr.mxu0 0.0
    %254 = vmatpush1.msra.mxu0 0.0
    %255 = vmatprep.subr.mxu0 0.0
    %256 = vmatpush1.msra.mxu0 0.0
    %257 = vmatprep.subr.mxu0 0.0
    %258 = vmatpush1.msra.mxu0 0.0
    %259 = vmatprep.subr.mxu0 0.0
    %260 = vmatpush1.msra.mxu0 0.0
    %261 = vmatprep.mubr.f32.mxu0 0.0
    %262 = vmatmul.mubr.f32.gmra.mrb[0].mxu0 %v195
    %v263 = vpop.f32.mrb[0].mxu0
    %v264 = vadd.f32 %v192, %v263
    %v265 = vpop.f32.mrb[0].mxu0
    %266 = vdwg.mxu0
    %v267 = vmax.f32 %v264, 0.0
    %v268 = vld [vmem:[%s9] sm:$0xf]
    %v269 = vld [vmem:[%s9 + $0x4] sm:$0xf]
    %v270 = vld [vmem:[%s9 + $0x8] sm:$0xf]
    %v271 = vld [vmem:[%s9 + $0xc] sm:$0xf]
    %v272 = vunpack.c.l.bf16 %v268
    %v273 = vunpack.c.l.bf16 %v269
    %v274 = vunpack.c.l.bf16 %v270
    %v275 = vunpack.c.l.bf16 %v271
    %v276 = vld [vmem:[%s10] sm:$0x1]
    %v278 = vlaneseq
    %v279 = vshrl.u32 %v278, 7
    %v280 = vsub.s32 0, %v279
    %v281 = vrot.slane %v276, %v280
    %v284 = vsel %vm105, %v267, 0
    %286 = vmatprep.subr.mxu0 0.0
    %287 = vmatpush1.msra.mxu0 %v272
    %288 = vmatprep.subr.mxu0 0.0
    %289 = vmatpush1.msra.mxu0 %v273
    %290 = vmatprep.subr.mxu0 0.0
    %291 = vmatpush1.msra.mxu0 %v274
    %292 = vmatprep.subr.mxu0 0.0
    %293 = vmatpush1.msra.mxu0 %v275
    %294 = vmatprep.subr.mxu0 0.0
    %295 = vmatpush1.msra.mxu0 0.0
    %296 = vmatprep.subr.mxu0 0.0
    %297 = vmatpush1.msra.mxu0 0.0
    %298 = vmatprep.subr.mxu0 0.0
    %299 = vmatpush1.msra.mxu0 0.0
    %300 = vmatprep.subr.mxu0 0.0
    %301 = vmatpush1.msra.mxu0 0.0
    %302 = vmatprep.subr.mxu0 0.0
    %303 = vmatpush1.msra.mxu0 0.0
    %304 = vmatprep.subr.mxu0 0.0
    %305 = vmatpush1.msra.mxu0 0.0
    %306 = vmatprep.subr.mxu0 0.0
    %307 = vmatpush1.msra.mxu0 0.0
    %308 = vmatprep.subr.mxu0 0.0
    %309 = vmatpush1.msra.mxu0 0.0
    %310 = vmatprep.subr.mxu0 0.0
    %311 = vmatpush1.msra.mxu0 0.0
    %312 = vmatprep.subr.mxu0 0.0
    %313 = vmatpush1.msra.mxu0 0.0
    %314 = vmatprep.subr.mxu0 0.0
    %315 = vmatpush1.msra.mxu0 0.0
    %316 = vmatprep.subr.mxu0 0.0
    %317 = vmatpush1.msra.mxu0 0.0
    %318 = vmatprep.subr.mxu0 0.0
    %319 = vmatpush1.msra.mxu0 0.0
    %320 = vmatprep.subr.mxu0 0.0
    %321 = vmatpush1.msra.mxu0 0.0
    %322 = vmatprep.subr.mxu0 0.0
    %323 = vmatpush1.msra.mxu0 0.0
    %324 = vmatprep.subr.mxu0 0.0
    %325 = vmatpush1.msra.mxu0 0.0
    %326 = vmatprep.subr.mxu0 0.0
    %327 = vmatpush1.msra.mxu0 0.0
    %328 = vmatprep.subr.mxu0 0.0
    %329 = vmatpush1.msra.mxu0 0.0
    %330 = vmatprep.subr.mxu0 0.0
    %331 = vmatpush1.msra.mxu0 0.0
    %332 = vmatprep.subr.mxu0 0.0
    %333 = vmatpush1.msra.mxu0 0.0
    %334 = vmatprep.subr.mxu0 0.0
    %335 = vmatpush1.msra.mxu0 0.0
    %336 = vmatprep.subr.mxu0 0.0
    %337 = vmatpush1.msra.mxu0 0.0
    %338 = vmatprep.subr.mxu0 0.0
    %339 = vmatpush1.msra.mxu0 0.0
    %340 = vmatprep.subr.mxu0 0.0
    %341 = vmatpush1.msra.mxu0 0.0
    %342 = vmatprep.subr.mxu0 0.0
    %343 = vmatpush1.msra.mxu0 0.0
    %344 = vmatprep.subr.mxu0 0.0
    %345 = vmatpush1.msra.mxu0 0.0
    %346 = vmatprep.subr.mxu0 0.0
    %347 = vmatpush1.msra.mxu0 0.0
    %348 = vmatprep.subr.mxu0 0.0
    %349 = vmatpush1.msra.mxu0 0.0
    %350 = vmatprep.mubr.f32.mxu0 0.0
    %351 = vmatmul.mubr.f32.gmra.mrb[0].mxu0 %v284
    %v352 = vpop.f32.mrb[0].mxu0
    %v353 = vadd.f32 %v281, %v352
    %v354 = vpop.f32.mrb[0].mxu0
    %355 = vdwg.mxu0
    %v356 = vmax.f32 %v353, 0.0
    %v357 = vld [vmem:[%s11] sm:$0xf]
    %v358 = vld [vmem:[%s11 + $0x4] sm:$0xf]
    %v359 = vld [vmem:[%s11 + $0x8] sm:$0xf]
    %v360 = vld [vmem:[%s11 + $0xc] sm:$0xf]
    %v361 = vunpack.c.l.bf16 %v357
    %v362 = vunpack.c.l.bf16 %v358
    %v363 = vunpack.c.l.bf16 %v359
    %v364 = vunpack.c.l.bf16 %v360
    %v365 = vld [vmem:[%s12] sm:$0x1]
    %v367 = vlaneseq
    %v368 = vshrl.u32 %v367, 7
    %v369 = vsub.s32 0, %v368
    %v370 = vrot.slane %v365, %v369
    %v373 = vsel %vm105, %v356, 0
    %375 = vmatprep.subr.mxu0 0.0
    %376 = vmatpush1.msra.mxu0 %v361
    %377 = vmatprep.subr.mxu0 0.0
    %378 = vmatpush1.msra.mxu0 %v362
    %379 = vmatprep.subr.mxu0 0.0
    %380 = vmatpush1.msra.mxu0 %v363
    %381 = vmatprep.subr.mxu0 0.0
    %382 = vmatpush1.msra.mxu0 %v364
    %383 = vmatprep.subr.mxu0 0.0
    %384 = vmatpush1.msra.mxu0 0.0
    %385 = vmatprep.subr.mxu0 0.0
    %386 = vmatpush1.msra.mxu0 0.0
    %387 = vmatprep.subr.mxu0 0.0
    %388 = vmatpush1.msra.mxu0 0.0
    %389 = vmatprep.subr.mxu0 0.0
    %390 = vmatpush1.msra.mxu0 0.0
    %391 = vmatprep.subr.mxu0 0.0
    %392 = vmatpush1.msra.mxu0 0.0
    %393 = vmatprep.subr.mxu0 0.0
    %394 = vmatpush1.msra.mxu0 0.0
    %395 = vmatprep.subr.mxu0 0.0
    %396 = vmatpush1.msra.mxu0 0.0
    %397 = vmatprep.subr.mxu0 0.0
    %398 = vmatpush1.msra.mxu0 0.0
    %399 = vmatprep.subr.mxu0 0.0
    %400 = vmatpush1.msra.mxu0 0.0
    %401 = vmatprep.subr.mxu0 0.0
    %402 = vmatpush1.msra.mxu0 0.0
    %403 = vmatprep.subr.mxu0 0.0
    %404 = vmatpush1.msra.mxu0 0.0
    %405 = vmatprep.subr.mxu0 0.0
    %406 = vmatpush1.msra.mxu0 0.0
    %407 = vmatprep.subr.mxu0 0.0
    %408 = vmatpush1.msra.mxu0 0.0
    %409 = vmatprep.subr.mxu0 0.0
    %410 = vmatpush1.msra.mxu0 0.0
    %411 = vmatprep.subr.mxu0 0.0
    %412 = vmatpush1.msra.mxu0 0.0
    %413 = vmatprep.subr.mxu0 0.0
    %414 = vmatpush1.msra.mxu0 0.0
    %415 = vmatprep.subr.mxu0 0.0
    %416 = vmatpush1.msra.mxu0 0.0
    %417 = vmatprep.subr.mxu0 0.0
    %418 = vmatpush1.msra.mxu0 0.0
    %419 = vmatprep.subr.mxu0 0.0
    %420 = vmatpush1.msra.mxu0 0.0
    %421 = vmatprep.subr.mxu0 0.0
    %422 = vmatpush1.msra.mxu0 0.0
    %423 = vmatprep.subr.mxu0 0.0
    %424 = vmatpush1.msra.mxu0 0.0
    %425 = vmatprep.subr.mxu0 0.0
    %426 = vmatpush1.msra.mxu0 0.0
    %427 = vmatprep.subr.mxu0 0.0
    %428 = vmatpush1.msra.mxu0 0.0
    %429 = vmatprep.subr.mxu0 0.0
    %430 = vmatpush1.msra.mxu0 0.0
    %431 = vmatprep.subr.mxu0 0.0
    %432 = vmatpush1.msra.mxu0 0.0
    %433 = vmatprep.subr.mxu0 0.0
    %434 = vmatpush1.msra.mxu0 0.0
    %435 = vmatprep.subr.mxu0 0.0
    %436 = vmatpush1.msra.mxu0 0.0
    %437 = vmatprep.subr.mxu0 0.0
    %438 = vmatpush1.msra.mxu0 0.0
    %439 = vmatprep.mubr.f32.mxu0 0.0
    %440 = vmatmul.mubr.f32.gmra.mrb[0].mxu0 %v373
    %v441 = vpop.f32.mrb[0].mxu0
    %v442 = vadd.f32 %v370, %v441
    %v443 = vpop.f32.mrb[0].mxu0
    %444 = vdwg.mxu0
    %v445 = vmax.f32 %v442, 0.0
    %v446 = vld [vmem:[%s13] sm:$0xf]
    %v447 = vld [vmem:[%s13 + $0x4] sm:$0xf]
    %v448 = vld [vmem:[%s13 + $0x8] sm:$0xf]
    %v449 = vld [vmem:[%s13 + $0xc] sm:$0xf]
    %v450 = vunpack.c.l.bf16 %v446
    %v451 = vunpack.c.l.bf16 %v447
    %v452 = vunpack.c.l.bf16 %v448
    %v453 = vunpack.c.l.bf16 %v449
    %v454 = vld [vmem:[%s14] sm:$0x1]
    %v456 = vlaneseq
    %v457 = vshrl.u32 %v456, 7
    %v458 = vsub.s32 0, %v457
    %v459 = vrot.slane %v454, %v458
    %v462 = vsel %vm105, %v445, 0
    %464 = vmatprep.subr.mxu0 0.0
    %465 = vmatpush1.msra.mxu0 %v450
    %466 = vmatprep.subr.mxu0 0.0
    %467 = vmatpush1.msra.mxu0 %v451
    %468 = vmatprep.subr.mxu0 0.0
    %469 = vmatpush1.msra.mxu0 %v452
    %470 = vmatprep.subr.mxu0 0.0
    %471 = vmatpush1.msra.mxu0 %v453
    %472 = vmatprep.subr.mxu0 0.0
    %473 = vmatpush1.msra.mxu0 0.0
    %474 = vmatprep.subr.mxu0 0.0
    %475 = vmatpush1.msra.mxu0 0.0
    %476 = vmatprep.subr.mxu0 0.0
    %477 = vmatpush1.msra.mxu0 0.0
    %478 = vmatprep.subr.mxu0 0.0
    %479 = vmatpush1.msra.mxu0 0.0
    %480 = vmatprep.subr.mxu0 0.0
    %481 = vmatpush1.msra.mxu0 0.0
    %482 = vmatprep.subr.mxu0 0.0
    %483 = vmatpush1.msra.mxu0 0.0
    %484 = vmatprep.subr.mxu0 0.0
    %485 = vmatpush1.msra.mxu0 0.0
    %486 = vmatprep.subr.mxu0 0.0
    %487 = vmatpush1.msra.mxu0 0.0
    %488 = vmatprep.subr.mxu0 0.0
    %489 = vmatpush1.msra.mxu0 0.0
    %490 = vmatprep.subr.mxu0 0.0
    %491 = vmatpush1.msra.mxu0 0.0
    %492 = vmatprep.subr.mxu0 0.0
    %493 = vmatpush1.msra.mxu0 0.0
    %494 = vmatprep.subr.mxu0 0.0
    %495 = vmatpush1.msra.mxu0 0.0
    %496 = vmatprep.subr.mxu0 0.0
    %497 = vmatpush1.msra.mxu0 0.0
    %498 = vmatprep.subr.mxu0 0.0
    %499 = vmatpush1.msra.mxu0 0.0
    %500 = vmatprep.subr.mxu0 0.0
    %501 = vmatpush1.msra.mxu0 0.0
    %502 = vmatprep.subr.mxu0 0.0
    %503 = vmatpush1.msra.mxu0 0.0
    %504 = vmatprep.subr.mxu0 0.0
    %505 = vmatpush1.msra.mxu0 0.0
    %506 = vmatprep.subr.mxu0 0.0
    %507 = vmatpush1.msra.mxu0 0.0
    %508 = vmatprep.subr.mxu0 0.0
    %509 = vmatpush1.msra.mxu0 0.0
    %510 = vmatprep.subr.mxu0 0.0
    %511 = vmatpush1.msra.mxu0 0.0
    %512 = vmatprep.subr.mxu0 0.0
    %513 = vmatpush1.msra.mxu0 0.0
    %514 = vmatprep.subr.mxu0 0.0
    %515 = vmatpush1.msra.mxu0 0.0
    %516 = vmatprep.subr.mxu0 0.0
    %517 = vmatpush1.msra.mxu0 0.0
    %518 = vmatprep.subr.mxu0 0.0
    %519 = vmatpush1.msra.mxu0 0.0
    %520 = vmatprep.subr.mxu0 0.0
    %521 = vmatpush1.msra.mxu0 0.0
    %522 = vmatprep.subr.mxu0 0.0
    %523 = vmatpush1.msra.mxu0 0.0
    %524 = vmatprep.subr.mxu0 0.0
    %525 = vmatpush1.msra.mxu0 0.0
    %526 = vmatprep.subr.mxu0 0.0
    %527 = vmatpush1.msra.mxu0 0.0
    %528 = vmatprep.mubr.f32.mxu0 0.0
    %529 = vmatmul.mubr.f32.gmra.mrb[0].mxu0 %v462
    %v530 = vpop.f32.mrb[0].mxu0
    %v531 = vadd.f32 %v459, %v530
    %v532 = vpop.f32.mrb[0].mxu0
    %533 = vdwg.mxu0
    %v534 = vld [vmem:[%s15] sm:$0xf]
    %v535 = vld [vmem:[%s15 + $0x4] sm:$0xf]
    %v536 = vld [vmem:[%s15 + $0x8] sm:$0xf]
    %v537 = vld [vmem:[%s15 + $0xc] sm:$0xf]
    %v538 = vunpack.c.l.bf16 %v534
    %v539 = vunpack.c.l.bf16 %v535
    %v540 = vunpack.c.l.bf16 %v536
    %v541 = vunpack.c.l.bf16 %v537
    %v542 = vld [vmem:[%s16] sm:$0x1]
    %v544 = vlaneseq
    %v545 = vshrl.u32 %v544, 7
    %v546 = vsub.s32 0, %v545
    %v547 = vrot.slane %v542, %v546
    %549 = vrot.lane.b32.xlu0 %v267, 96
    %v550 = vpop.permute.xlu0 %549
    %v551 = vsel %vm105, %v550, 0
    %553 = vmatprep.subr.mxu0 0.0
    %554 = vmatpush1.msra.mxu0 %v538
    %555 = vmatprep.subr.mxu0 0.0
    %556 = vmatpush1.msra.mxu0 %v539
    %557 = vmatprep.subr.mxu0 0.0
    %558 = vmatpush1.msra.mxu0 %v540
    %559 = vmatprep.subr.mxu0 0.0
    %560 = vmatpush1.msra.mxu0 %v541
    %561 = vmatprep.subr.mxu0 0.0
    %562 = vmatpush1.msra.mxu0 0.0
    %563 = vmatprep.subr.mxu0 0.0
    %564 = vmatpush1.msra.mxu0 0.0
    %565 = vmatprep.subr.mxu0 0.0
    %566 = vmatpush1.msra.mxu0 0.0
    %567 = vmatprep.subr.mxu0 0.0
    %568 = vmatpush1.msra.mxu0 0.0
    %569 = vmatprep.subr.mxu0 0.0
    %570 = vmatpush1.msra.mxu0 0.0
    %571 = vmatprep.subr.mxu0 0.0
    %572 = vmatpush1.msra.mxu0 0.0
    %573 = vmatprep.subr.mxu0 0.0
    %574 = vmatpush1.msra.mxu0 0.0
    %575 = vmatprep.subr.mxu0 0.0
    %576 = vmatpush1.msra.mxu0 0.0
    %577 = vmatprep.subr.mxu0 0.0
    %578 = vmatpush1.msra.mxu0 0.0
    %579 = vmatprep.subr.mxu0 0.0
    %580 = vmatpush1.msra.mxu0 0.0
    %581 = vmatprep.subr.mxu0 0.0
    %582 = vmatpush1.msra.mxu0 0.0
    %583 = vmatprep.subr.mxu0 0.0
    %584 = vmatpush1.msra.mxu0 0.0
    %585 = vmatprep.subr.mxu0 0.0
    %586 = vmatpush1.msra.mxu0 0.0
    %587 = vmatprep.subr.mxu0 0.0
    %588 = vmatpush1.msra.mxu0 0.0
    %589 = vmatprep.subr.mxu0 0.0
    %590 = vmatpush1.msra.mxu0 0.0
    %591 = vmatprep.subr.mxu0 0.0
    %592 = vmatpush1.msra.mxu0 0.0
    %593 = vmatprep.subr.mxu0 0.0
    %594 = vmatpush1.msra.mxu0 0.0
    %595 = vmatprep.subr.mxu0 0.0
    %596 = vmatpush1.msra.mxu0 0.0
    %597 = vmatprep.subr.mxu0 0.0
    %598 = vmatpush1.msra.mxu0 0.0
    %599 = vmatprep.subr.mxu0 0.0
    %600 = vmatpush1.msra.mxu0 0.0
    %601 = vmatprep.subr.mxu0 0.0
    %602 = vmatpush1.msra.mxu0 0.0
    %603 = vmatprep.subr.mxu0 0.0
    %604 = vmatpush1.msra.mxu0 0.0
    %605 = vmatprep.subr.mxu0 0.0
    %606 = vmatpush1.msra.mxu0 0.0
    %607 = vmatprep.subr.mxu0 0.0
    %608 = vmatpush1.msra.mxu0 0.0
    %609 = vmatprep.subr.mxu0 0.0
    %610 = vmatpush1.msra.mxu0 0.0
    %611 = vmatprep.subr.mxu0 0.0
    %612 = vmatpush1.msra.mxu0 0.0
    %613 = vmatprep.subr.mxu0 0.0
    %614 = vmatpush1.msra.mxu0 0.0
    %615 = vmatprep.subr.mxu0 0.0
    %616 = vmatpush1.msra.mxu0 0.0
    %617 = vmatprep.mubr.f32.mxu0 0.0
    %618 = vmatmul.mubr.f32.gmra.mrb[0].mxu0 %v551
    %v619 = vpop.f32.mrb[0].mxu0
    %v620 = vadd.f32 %v547, %v619
    %v621 = vpop.f32.mrb[0].mxu0
    %622 = vdwg.mxu0
    %v623 = vmax.f32 %v620, 0.0
    %v624 = vld [vmem:[%s17] sm:$0xf]
    %v625 = vld [vmem:[%s17 + $0x4] sm:$0xf]
    %v626 = vld [vmem:[%s17 + $0x8] sm:$0xf]
    %v627 = vld [vmem:[%s17 + $0xc] sm:$0xf]
    %v628 = vunpack.c.l.bf16 %v624
    %v629 = vunpack.c.l.bf16 %v625
    %v630 = vunpack.c.l.bf16 %v626
    %v631 = vunpack.c.l.bf16 %v627
    %v632 = vld [vmem:[%s18] sm:$0x1]
    %v634 = vlaneseq
    %v635 = vshrl.u32 %v634, 7
    %v636 = vsub.s32 0, %v635
    %v637 = vrot.slane %v632, %v636
    %v640 = vsel %vm105, %v623, 0
    %642 = vmatprep.subr.mxu0 0.0
    %643 = vmatpush1.msra.mxu0 %v628
    %644 = vmatprep.subr.mxu0 0.0
    %645 = vmatpush1.msra.mxu0 %v629
    %646 = vmatprep.subr.mxu0 0.0
    %647 = vmatpush1.msra.mxu0 %v630
    %648 = vmatprep.subr.mxu0 0.0
    %649 = vmatpush1.msra.mxu0 %v631
    %650 = vmatprep.subr.mxu0 0.0
    %651 = vmatpush1.msra.mxu0 0.0
    %652 = vmatprep.subr.mxu0 0.0
    %653 = vmatpush1.msra.mxu0 0.0
    %654 = vmatprep.subr.mxu0 0.0
    %655 = vmatpush1.msra.mxu0 0.0
    %656 = vmatprep.subr.mxu0 0.0
    %657 = vmatpush1.msra.mxu0 0.0
    %658 = vmatprep.subr.mxu0 0.0
    %659 = vmatpush1.msra.mxu0 0.0
    %660 = vmatprep.subr.mxu0 0.0
    %661 = vmatpush1.msra.mxu0 0.0
    %662 = vmatprep.subr.mxu0 0.0
    %663 = vmatpush1.msra.mxu0 0.0
    %664 = vmatprep.subr.mxu0 0.0
    %665 = vmatpush1.msra.mxu0 0.0
    %666 = vmatprep.subr.mxu0 0.0
    %667 = vmatpush1.msra.mxu0 0.0
    %668 = vmatprep.subr.mxu0 0.0
    %669 = vmatpush1.msra.mxu0 0.0
    %670 = vmatprep.subr.mxu0 0.0
    %671 = vmatpush1.msra.mxu0 0.0
    %672 = vmatprep.subr.mxu0 0.0
    %673 = vmatpush1.msra.mxu0 0.0
    %674 = vmatprep.subr.mxu0 0.0
    %675 = vmatpush1.msra.mxu0 0.0
    %676 = vmatprep.subr.mxu0 0.0
    %677 = vmatpush1.msra.mxu0 0.0
    %678 = vmatprep.subr.mxu0 0.0
    %679 = vmatpush1.msra.mxu0 0.0
    %680 = vmatprep.subr.mxu0 0.0
    %681 = vmatpush1.msra.mxu0 0.0
    %682 = vmatprep.subr.mxu0 0.0
    %683 = vmatpush1.msra.mxu0 0.0
    %684 = vmatprep.subr.mxu0 0.0
    %685 = vmatpush1.msra.mxu0 0.0
    %686 = vmatprep.subr.mxu0 0.0
    %687 = vmatpush1.msra.mxu0 0.0
    %688 = vmatprep.subr.mxu0 0.0
    %689 = vmatpush1.msra.mxu0 0.0
    %690 = vmatprep.subr.mxu0 0.0
    %691 = vmatpush1.msra.mxu0 0.0
    %692 = vmatprep.subr.mxu0 0.0
    %693 = vmatpush1.msra.mxu0 0.0
    %694 = vmatprep.subr.mxu0 0.0
    %695 = vmatpush1.msra.mxu0 0.0
    %696 = vmatprep.subr.mxu0 0.0
    %697 = vmatpush1.msra.mxu0 0.0
    %698 = vmatprep.subr.mxu0 0.0
    %699 = vmatpush1.msra.mxu0 0.0
    %700 = vmatprep.subr.mxu0 0.0
    %701 = vmatpush1.msra.mxu0 0.0
    %702 = vmatprep.subr.mxu0 0.0
    %703 = vmatpush1.msra.mxu0 0.0
    %704 = vmatprep.subr.mxu0 0.0
    %705 = vmatpush1.msra.mxu0 0.0
    %706 = vmatprep.mubr.f32.mxu0 0.0
    %707 = vmatmul.mubr.f32.gmra.mrb[0].mxu0 %v640
    %v708 = vpop.f32.mrb[0].mxu0
    %v709 = vadd.f32 %v637, %v708
    %v710 = vpop.f32.mrb[0].mxu0
    %711 = vdwg.mxu0
    %v712 = vmax.f32 %v709, 0.0
    %v713 = vld [vmem:[%s19] sm:$0xf]
    %v714 = vld [vmem:[%s19 + $0x4] sm:$0xf]
    %v715 = vld [vmem:[%s19 + $0x8] sm:$0xf]
    %v716 = vld [vmem:[%s19 + $0xc] sm:$0xf]
    %v717 = vunpack.c.l.bf16 %v713
    %v718 = vunpack.c.l.bf16 %v714
    %v719 = vunpack.c.l.bf16 %v715
    %v720 = vunpack.c.l.bf16 %v716
    %v721 = vld [vmem:[%s20] sm:$0x1]
    %v723 = vlaneseq
    %v724 = vshrl.u32 %v723, 7
    %v725 = vsub.s32 0, %v724
    %v726 = vrot.slane %v721, %v725
    %v729 = vsel %vm105, %v712, 0
    %731 = vmatprep.subr.mxu0 0.0
    %732 = vmatpush1.msra.mxu0 %v717
    %733 = vmatprep.subr.mxu0 0.0
    %734 = vmatpush1.msra.mxu0 %v718
    %735 = vmatprep.subr.mxu0 0.0
    %736 = vmatpush1.msra.mxu0 %v719
    %737 = vmatprep.subr.mxu0 0.0
    %738 = vmatpush1.msra.mxu0 %v720
    %739 = vmatprep.subr.mxu0 0.0
    %740 = vmatpush1.msra.mxu0 0.0
    %741 = vmatprep.subr.mxu0 0.0
    %742 = vmatpush1.msra.mxu0 0.0
    %743 = vmatprep.subr.mxu0 0.0
    %744 = vmatpush1.msra.mxu0 0.0
    %745 = vmatprep.subr.mxu0 0.0
    %746 = vmatpush1.msra.mxu0 0.0
    %747 = vmatprep.subr.mxu0 0.0
    %748 = vmatpush1.msra.mxu0 0.0
    %749 = vmatprep.subr.mxu0 0.0
    %750 = vmatpush1.msra.mxu0 0.0
    %751 = vmatprep.subr.mxu0 0.0
    %752 = vmatpush1.msra.mxu0 0.0
    %753 = vmatprep.subr.mxu0 0.0
    %754 = vmatpush1.msra.mxu0 0.0
    %755 = vmatprep.subr.mxu0 0.0
    %756 = vmatpush1.msra.mxu0 0.0
    %757 = vmatprep.subr.mxu0 0.0
    %758 = vmatpush1.msra.mxu0 0.0
    %759 = vmatprep.subr.mxu0 0.0
    %760 = vmatpush1.msra.mxu0 0.0
    %761 = vmatprep.subr.mxu0 0.0
    %762 = vmatpush1.msra.mxu0 0.0
    %763 = vmatprep.subr.mxu0 0.0
    %764 = vmatpush1.msra.mxu0 0.0
    %765 = vmatprep.subr.mxu0 0.0
    %766 = vmatpush1.msra.mxu0 0.0
    %767 = vmatprep.subr.mxu0 0.0
    %768 = vmatpush1.msra.mxu0 0.0
    %769 = vmatprep.subr.mxu0 0.0
    %770 = vmatpush1.msra.mxu0 0.0
    %771 = vmatprep.subr.mxu0 0.0
    %772 = vmatpush1.msra.mxu0 0.0
    %773 = vmatprep.subr.mxu0 0.0
    %774 = vmatpush1.msra.mxu0 0.0
    %775 = vmatprep.subr.mxu0 0.0
    %776 = vmatpush1.msra.mxu0 0.0
    %777 = vmatprep.subr.mxu0 0.0
    %778 = vmatpush1.msra.mxu0 0.0
    %779 = vmatprep.subr.mxu0 0.0
    %780 = vmatpush1.msra.mxu0 0.0
    %781 = vmatprep.subr.mxu0 0.0
    %782 = vmatpush1.msra.mxu0 0.0
    %783 = vmatprep.subr.mxu0 0.0
    %784 = vmatpush1.msra.mxu0 0.0
    %785 = vmatprep.subr.mxu0 0.0
    %786 = vmatpush1.msra.mxu0 0.0
    %787 = vmatprep.subr.mxu0 0.0
    %788 = vmatpush1.msra.mxu0 0.0
    %789 = vmatprep.subr.mxu0 0.0
    %790 = vmatpush1.msra.mxu0 0.0
    %791 = vmatprep.subr.mxu0 0.0
    %792 = vmatpush1.msra.mxu0 0.0
    %793 = vmatprep.subr.mxu0 0.0
    %794 = vmatpush1.msra.mxu0 0.0
    %795 = vmatprep.mubr.f32.mxu0 0.0
    %796 = vmatmul.mubr.f32.gmra.mrb[0].mxu0 %v729
    %v797 = vpop.f32.mrb[0].mxu0
    %v798 = vadd.f32 %v726, %v797
    %v799 = vpop.f32.mrb[0].mxu0
    %800 = vdwg.mxu0
    %v801 = vmul.f32 %v531, 0.1
    %vm802 = vcmask 15360
    %v803 = vsel %vm802, %v801, -inf
    %804 = vmax.xlane.f32.xlu0 %v803
    %v805 = vpop.xlane.xlu0 %804
    %v806 = vsub.f32 %v801, %v805
    %v807 = vmul.f32 %v806, 1.442695
    %v808 = vpow.pop %v807
    %v809 = vsel %vm802, %v808, 0.0
    %810 = vadd.xlane.f32.xlu0 %v809
    %v811 = vpop.xlane.xlu0 %810
    %v812 = vrcp.pop %v811
    %v813 = vmul.f32 %v808, %v812
    %s814 = sld [smem:[#allocation2]]
    %v815 = vstv %s814
    %v816 = vmul.f32 %v813, %v815
    %v817 = vmul.f32 %v798, 0.1
    %v818 = vld [vmem:[%s6] sm:$0x1]
    %vm819 = vcmp.gt.f32.partialorder %v818, 0.0
    %v820 = vsel %vm819, 1, 0
    %v821 = vlaneseq
    %v822 = vshrl.u32 %v821, 7
    %v823 = vsub.s32 0, %v822
    %v824 = vrot.slane %v820, %v823
    %vm825 = vcmp.eq.s32.totalorder %v824, 1
    %v826 = vsel %vm825, %v817, -1e+30
    %vm827 = vcmask 64512
    %v828 = vsel %vm827, %v826, -inf
    %829 = vmax.xlane.f32.xlu0 %v828
    %v830 = vpop.xlane.xlu0 %829
    %v831 = vsel %vm825, %v830, 0.0
    %v832 = vld [vmem:[%s6 + $0x1] sm:$0x1]
    %vm833 = vcmp.gt.f32.partialorder %v832, 0.0
    %v834 = vsel %vm833, 1, 0
    %v835 = vlaneseq
    %v836 = vshrl.u32 %v835, 7
    %v837 = vsub.s32 0, %v836
    %v838 = vrot.slane %v834, %v837
    %vm839 = vcmp.eq.s32.totalorder %v838, 1
    %v840 = vsel %vm839, %v817, -1e+30
    %v841 = vsel %vm827, %v840, -inf
    %842 = vmax.xlane.f32.xlu0 %v841
    %v843 = vpop.xlane.xlu0 %842
    %v844 = vsel %vm839, %v843, %v831
    %v845 = vsub.f32 %v817, %v844
    %v846 = vmul.f32 %v845, 1.442695
    %v847 = vpow.pop %v846
    %v848 = vsel %vm825, %v847, 0.0
    %v849 = vsel %vm827, %v848, 0.0
    %850 = vadd.xlane.f32.xlu0 %v849
    %v851 = vpop.xlane.xlu0 %850
    %v852 = vsel %vm825, %v851, 1.0
    %v853 = vsel %vm839, %v847, 0.0
    %v854 = vsel %vm827, %v853, 0.0
    %855 = vadd.xlane.f32.xlu0 %v854
    %v856 = vpop.xlane.xlu0 %855
    %v857 = vsel %vm839, %v856, %v852
    %v858 = vrcp.pop %v857
    %v859 = vmul.f32 %v847, %v858
    %s860 = sld [smem:[#allocation3]]
    %v861 = vstv %s860
    %v862 = vmul.f32 %v859, %v861
    %v863 = vmul.f32 %v176, %v862
    %v864 = vld [vmem:[%s5] sm:$0xff]
    %v866 = vsel %vm827, %v863, 0
    %868 = vmatprep.subr.mxu0 0.0
    %869 = vmatpush1.msra.mxu0 %v864
    %870 = vmatprep.subr.mxu0 0.0
    %871 = vmatpush1.msra.mxu0 0.0
    %872 = vmatprep.subr.mxu0 0.0
    %873 = vmatpush1.msra.mxu0 0.0
    %874 = vmatprep.subr.mxu0 0.0
    %875 = vmatpush1.msra.mxu0 0.0
    %876 = vmatprep.subr.mxu0 0.0
    %877 = vmatpush1.msra.mxu0 0.0
    %878 = vmatprep.subr.mxu0 0.0
    %879 = vmatpush1.msra.mxu0 0.0
    %880 = vmatprep.subr.mxu0 0.0
    %881 = vmatpush1.msra.mxu0 0.0
    %882 = vmatprep.subr.mxu0 0.0
    %883 = vmatpush1.msra.mxu0 0.0
    %884 = vmatprep.subr.mxu0 0.0
    %885 = vmatpush1.msra.mxu0 0.0
    %886 = vmatprep.subr.mxu0 0.0
    %887 = vmatpush1.msra.mxu0 0.0
    %888 = vmatprep.subr.mxu0 0.0
    %889 = vmatpush1.msra.mxu0 0.0
    %890 = vmatprep.subr.mxu0 0.0
    %891 = vmatpush1.msra.mxu0 0.0
    %892 = vmatprep.subr.mxu0 0.0
    %893 = vmatpush1.msra.mxu0 0.0
    %894 = vmatprep.subr.mxu0 0.0
    %895 = vmatpush1.msra.mxu0 0.0
    %896 = vmatprep.subr.mxu0 0.0
    %897 = vmatpush1.msra.mxu0 0.0
    %898 = vmatprep.subr.mxu0 0.0
    %899 = vmatpush1.msra.mxu0 0.0
    %900 = vmatprep.subr.mxu0 0.0
    %901 = vmatpush1.msra.mxu0 0.0
    %902 = vmatprep.subr.mxu0 0.0
    %903 = vmatpush1.msra.mxu0 0.0
    %904 = vmatprep.subr.mxu0 0.0
    %905 = vmatpush1.msra.mxu0 0.0
    %906 = vmatprep.subr.mxu0 0.0
    %907 = vmatpush1.msra.mxu0 0.0
    %908 = vmatprep.subr.mxu0 0.0
    %909 = vmatpush1.msra.mxu0 0.0
    %910 = vmatprep.subr.mxu0 0.0
    %911 = vmatpush1.msra.mxu0 0.0
    %912 = vmatprep.subr.mxu0 0.0
    %913 = vmatpush1.msra.mxu0 0.0
    %914 = vmatprep.subr.mxu0 0.0
    %915 = vmatpush1.msra.mxu0 0.0
    %916 = vmatprep.subr.mxu0 0.0
    %917 = vmatpush1.msra.mxu0 0.0
    %918 = vmatprep.subr.mxu0 0.0
    %919 = vmatpush1.msra.mxu0 0.0
    %920 = vmatprep.subr.mxu0 0.0
    %921 = vmatpush1.msra.mxu0 0.0
    %922 = vmatprep.subr.mxu0 0.0
    %923 = vmatpush1.msra.mxu0 0.0
    %924 = vmatprep.subr.mxu0 0.0
    %925 = vmatpush1.msra.mxu0 0.0
    %926 = vmatprep.subr.mxu0 0.0
    %927 = vmatpush1.msra.mxu0 0.0
    %928 = vmatprep.subr.mxu0 0.0
    %929 = vmatpush1.msra.mxu0 0.0
    %930 = vmatprep.subr.mxu0 0.0
    %931 = vmatpush1.msra.mxu0 0.0
    %932 = vmatprep.mubr.f32.mxu0 0.0
    %933 = vmatmul.mubr.f32.gmra.mrb[0].mxu0 %v866
    %v934 = vpop.f32.mrb[0].mxu0
    %v935 = vadd.f32 0.0, %v934
    %v936 = vpop.f32.mrb[0].mxu0
    %937 = vdwg.mxu0
    %v938 = vmul.f32 %v935, %v816
    %v939 = vsel %vm802, %v938, 0.0
    %940 = vadd.xlane.f32.xlu0 %v939
    %v941 = vpop.xlane.xlu0 %940
    %942 = vst [vmem:[#allocation9] sm:$0xff] 0.0
    %943 = vst.msk [vmem:[#allocation9] sm:$0xff] %vm827, %v176
    %945 = vrot.lane.b32.xlu0 %v798, 8
    %v946 = vpop.permute.xlu0 %945
    %vm948 = vcmask 130112
    %949 = vst.msk [vmem:[#allocation9] sm:$0xff] %vm948, %v946
    %951 = vrot.lane.b32.xlu0 %v816, 16
    %v952 = vpop.permute.xlu0 %951
    %vm954 = vcmask 146560
    %955 = vst.msk [vmem:[#allocation9] sm:$0xff] %vm954, %v952
    %957 = vrot.lane.b32.xlu0 %v862, 18
    %v958 = vpop.permute.xlu0 %957
    %vm960 = vcmask 212112
    %961 = vst.msk [vmem:[#allocation9] sm:$0xff] %vm960, %v958
    %963 = vrot.lane.b32.xlu0 %v935, 26
    %v964 = vpop.permute.xlu0 %963
    %vm966 = vcmask 228560
    %967 = vst.msk [vmem:[#allocation9] sm:$0xff] %vm966, %v964
    %vm968 = vcmask 236768
    %969 = vst.msk [vmem:[#allocation9] sm:$0xff] %vm968, %v941
    // Predicated region
    $region94: #{tpu_custom_call.1} parent=1 // pred_check
      _
    $region95: #{tpu_custom_call.1} parent=1 // pred_check_branch
      %971 = sbr.rel (0) target = $region97
    $region96: #{tpu_custom_call.1} parent=1 // pred_region
      %s973 = ssub.s32 128, 128
      %974 = vsyncadd [#allocation6], %s973
      %s976 = sshll.u32 [#allocation9], 4
      %s977 = int_to_ptr.vmem [resolvable:$true] %s976
      %979 = dma.vmem_to_hbm [thread:$0]  %s977, 128, %s21, [#allocation6]
    $region97: #{tpu_custom_call.1} parent=1 // pred_fallthru
      _
    // Predicated region
    $region98: #{tpu_custom_call.1} parent=1 // pred_check
      _
    $region99: #{tpu_custom_call.1} parent=1 // pred_check_branch
      %981 = sbr.rel (0) target = $region101
    $region100: #{tpu_custom_call.1} parent=1 // pred_region
      %982 = dma.done [#allocation6], 128
    $region101: #{tpu_custom_call.1} parent=1 // pred_fallthru
      _
    %983 = vsyncpa [#allocation5], 1
    %984 = vsyncpa [#allocation8], 1
    %985 = vsyncpa [#allocation6], 1

</llo_original>
